<compile_context>
chip_gen: v6e
topology: v6e:2x2x1
jax: 0.10.0
libtpu: 0.0.40
codegen_flags: <defaults>
</compile_context>

<pallas_src>
import math
import jax
import jax.numpy as jnp
from jax.experimental import pallas as pl
from jax.experimental.pallas import tpu as pltpu

# ---- small synthetic config (what the forward implies) ----
B, T   = 2, 8        # batch, sequence length
VOCAB  = 64          # vocab_size
VPAD   = 128         # lane-dense padded vocab for the logits store
CTX    = 16          # context_window
C      = 32          # hidden_dim (n_embd)
NH     = 2           # attention heads
HD     = C // NH     # head dim
FF     = 4 * C       # MLP hidden dim (=128, lane-dense)
DEPTH  = 2           # number of Blocks
EPS    = 1e-5        # LayerNorm eps (torch default)
BT     = B * T
NEG    = -1e30       # finite mask value (avoids exp(-inf - (-inf)) NaN traps)


def _layernorm(x, w, b):
    mu = jnp.mean(x, axis=-1, keepdims=True)
    var = jnp.mean((x - mu) ** 2, axis=-1, keepdims=True)
    return (x - mu) * jax.lax.rsqrt(var + EPS) * w + b


def _gelu_tanh(x):
    # tanh-approx GELU (nanoGPT "new GELU")
    # TODO(synk): if the reference FFN uses torch nn.GELU default (exact erf),
    # outputs differ by <~1e-3.
    return 0.5 * x * (1.0 + jnp.tanh(math.sqrt(2.0 / math.pi) * (x + 0.044715 * x * x * x)))


# -------- single kernel, grid=(B, DEPTH): embeddings + one Block per step + head --------
def gpt_kernel(idx_ref, wte_ref, pos_ref, wte_t_ref,
               lnp_ref, wqkv_ref, bqkv_ref, wattp_ref,
               wfc_ref, bfc_ref, wmp_ref, lnf_ref,
               logits_ref, x_scr):
    b = pl.program_id(0)
    l = pl.program_id(1)

    # ---- token + position embeddings for THIS sequence, only at layer 0 ----
    @pl.when(l == 0)
    def _():
        row0 = pl.multiple_of(b * T, T)
        ids = idx_ref[pl.ds(row0, T), :]                            # (T, 1) int32
        vocab_iota = jax.lax.broadcasted_iota(jnp.int32, (T, VOCAB), 1)
        onehot = (vocab_iota == ids).astype(jnp.bfloat16)           # (T, VOCAB)
        # TODO(synk): for large vocab replace one-hot matmul with a scalar-prefetched
        # row gather (PrefetchScalarGridSpec + pl.Element index_map on wte).
        tok = jnp.dot(onehot, wte_ref[...], preferred_element_type=jnp.float32)
        x_scr[...] = tok + pos_ref[...]                             # dropout p=0 -> identity

    x = x_scr[...]                                                  # (T, C) f32 residual

    lnp = lnp_ref[...]                                              # (6, C) packed vectors
    ln1w, ln1b = lnp[0:1, :], lnp[1:2, :]
    ln2w, ln2b = lnp[2:3, :], lnp[3:4, :]
    battp, bmp = lnp[4:5, :], lnp[5:6, :]

    # ---- ln_1 + causal self-attention (single fused QKV matmul, bf16 on the MXU) ----
    h = _layernorm(x, ln1w, ln1b).astype(jnp.bfloat16)
    qkv = jnp.dot(h, wqkv_ref[...], preferred_element_type=jnp.float32) + bqkv_ref[...]
    qkv = qkv.astype(jnp.bfloat16)                                  # (T, 3C)

    r = jax.lax.broadcasted_iota(jnp.int32, (T, T), 0)
    c = jax.lax.broadcasted_iota(jnp.int32, (T, T), 1)
    causal = r >= c

    heads = []
    for hd in range(NH):
        qh = qkv[:, hd * HD:(hd + 1) * HD]          # 1/sqrt(HD) folded into Wq at init
        kh = qkv[:, C + hd * HD:C + (hd + 1) * HD]
        vh = qkv[:, 2 * C + hd * HD:2 * C + (hd + 1) * HD]
        s = jax.lax.dot_general(qh, kh, (((1,), (1,)), ((), ())),
                                preferred_element_type=jnp.float32)  # (T, T)
        s = jnp.where(causal, s, NEG)
        p = jnp.exp(s - jnp.max(s, axis=-1, keepdims=True))
        p = p * pl.reciprocal(jnp.sum(p, axis=-1, keepdims=True), approx=True)
        heads.append(jnp.dot(p.astype(jnp.bfloat16), vh,
                             preferred_element_type=jnp.float32))    # (T, HD)

    att_in = jnp.concatenate(heads, axis=-1).astype(jnp.bfloat16)    # (T, C)
    att = jnp.dot(att_in, wattp_ref[...], preferred_element_type=jnp.float32) + battp
    x1 = x + att

    # ---- ln_2 + MLP (c_fc -> GELU -> c_proj) ----
    h2 = _layernorm(x1, ln2w, ln2b).astype(jnp.bfloat16)
    ff = jnp.dot(h2, wfc_ref[...], preferred_element_type=jnp.float32) + bfc_ref[...]
    ff = _gelu_tanh(ff)
    ff = jnp.dot(ff.astype(jnp.bfloat16), wmp_ref[...],
                 preferred_element_type=jnp.float32) + bmp
    x_new = x1 + ff
    x_scr[...] = x_new

    # ---- ln_f + tied lm_head on all T rows (lane-dense padded vocab), last layer ----
    @pl.when(l == DEPTH - 1)
    def _():
        hf = _layernorm(x_new, lnf_ref[0:1, :], lnf_ref[1:2, :]).astype(jnp.bfloat16)
        logits_ref[...] = jnp.dot(hf, wte_t_ref[...],
                                  preferred_element_type=jnp.float32)


def gpt_forward(idx, params):
    b, t = idx.shape
    assert b == B and t == T and t <= CTX
    idx_col = idx.reshape(BT, 1).astype(jnp.int32)
    pos = params['wpe'][:t, :]                       # precomputed outside the kernel

    args = [idx_col, params['wte'], pos, params['wte_t'],
            params['lnp'], params['wqkv'], params['bqkv'], params['wattp'],
            params['wfc'], params['bfc'], params['wmp'], params['lnf']]

    def full_spec(a):
        nd = a.ndim
        return pl.BlockSpec(a.shape, lambda bb, ll, nd=nd: (0,) * nd)

    def layer_spec(a):                               # (DEPTH, ...) -> per-layer block
        nd = a.ndim
        return pl.BlockSpec((None,) + a.shape[1:],
                            lambda bb, ll, nd=nd: (ll,) + (0,) * (nd - 1))

    in_specs = [full_spec(idx_col), full_spec(params['wte']), full_spec(pos),
                full_spec(params['wte_t']),
                layer_spec(params['lnp']), layer_spec(params['wqkv']),
                layer_spec(params['bqkv']), layer_spec(params['wattp']),
                layer_spec(params['wfc']), layer_spec(params['bfc']),
                layer_spec(params['wmp']), full_spec(params['lnf'])]

    logits_pad = pl.pallas_call(
        gpt_kernel,
        out_shape=jax.ShapeDtypeStruct((B, T, VPAD), jnp.float32),
        grid=(B, DEPTH),
        in_specs=in_specs,
        out_specs=pl.BlockSpec((None, T, VPAD), lambda bb, ll: (bb, 0, 0)),
        scratch_shapes=[pltpu.VMEM((T, C), jnp.float32)],
        compiler_params=pltpu.CompilerParams(
            dimension_semantics=("parallel", "arbitrary")),
    )(*args)

    # targets=None generation path: logits on the LAST token only; drop vocab padding.
    return logits_pad[:, t - 1:t, :VOCAB]            # (B, 1, VOCAB); loss = None
# TODO(synk): cross-entropy training path (targets != None) and dropout p>0 not
# implemented; only the eval/generation path is reproduced here.


# ----------------- parameter init (deterministic, matches _init_weights) -----------------
def init_params():
    key = jax.random.PRNGKey(0)
    keys = iter(jax.random.split(key, 64))

    def nrm(shape, std=0.02):
        return (std * jax.random.normal(next(keys), shape)).astype(jnp.float32)

    proj_std = 0.02 / math.sqrt(2 * DEPTH)
    ones_c = jnp.ones((C,), jnp.float32)
    zeros_c = jnp.zeros((C,), jnp.float32)
    q_scale = 1.0 / math.sqrt(HD)

    wte = nrm((VOCAB, C))                            # tied with lm_head
    wpe = nrm((CTX, C))

    lnp, wqkv, bqkv, wattp, wfc, bfc, wmp = ([] for _ in range(7))
    for _ in range(DEPTH):
        w_attn_t = nrm((3 * C, C)).T                 # torch (out,in) -> (in,out) = (C, 3C)
        w_attn_t = w_attn_t.at[:, 0:C].multiply(q_scale)   # fold 1/sqrt(HD) into Wq
        wqkv.append(w_attn_t.astype(jnp.bfloat16))
        b_attn = jnp.zeros((1, 3 * C), jnp.float32)
        bqkv.append(b_attn.at[:, 0:C].multiply(q_scale))   # scale bq too (zero anyway)
        wattp.append(nrm((C, C), proj_std).T.astype(jnp.bfloat16))   # attn c_proj
        wfc.append(nrm((FF, C)).T.astype(jnp.bfloat16))              # (C, FF)
        bfc.append(jnp.zeros((1, FF), jnp.float32))
        wmp.append(nrm((C, FF), proj_std).T.astype(jnp.bfloat16))    # mlp c_proj (FF, C)
        lnp.append(jnp.stack(                        # [ln1w, ln1b, ln2w, ln2b, battp, bmp]
            [ones_c, zeros_c, ones_c, zeros_c, zeros_c, zeros_c], axis=0))

    # tied lm_head weight, transposed ONCE at init and zero-padded to 128 lanes
    wte_t_pad = jnp.zeros((C, VPAD), jnp.float32).at[:, :VOCAB].set(wte.T)

    return {
        'wte': wte.astype(jnp.bfloat16),             # (VOCAB, C) bf16 matmul operand
        'wpe': wpe,                                  # (CTX, C) f32
        'wte_t': wte_t_pad.astype(jnp.bfloat16),     # (C, VPAD)
        'lnp': jnp.stack(lnp, 0),                    # (DEPTH, 6, C) f32
        'wqkv': jnp.stack(wqkv, 0),                  # (DEPTH, C, 3C) bf16
        'bqkv': jnp.stack(bqkv, 0),                  # (DEPTH, 1, 3C) f32
        'wattp': jnp.stack(wattp, 0),                # (DEPTH, C, C) bf16
        'wfc': jnp.stack(wfc, 0),                    # (DEPTH, C, FF) bf16
        'bfc': jnp.stack(bfc, 0),                    # (DEPTH, 1, FF) f32
        'wmp': jnp.stack(wmp, 0),                    # (DEPTH, FF, C) bf16
        'lnf': jnp.stack([ones_c, zeros_c], 0),      # (2, C) f32
    }


if __name__ == "__main__":
    params = init_params()
    idx = jax.random.randint(jax.random.PRNGKey(0), (B, T), 0, VOCAB, dtype=jnp.int32)
    logits = jax.jit(gpt_forward)(idx, params)
    jax.block_until_ready(logits)
    assert logits.shape == (B, 1, VOCAB)
    assert bool(jnp.all(jnp.isfinite(logits)))
    print("KERNEL_OK")
</pallas_src>

<mosaic_0001>
module attributes {stable_mosaic.version = 11 : i64} {
  func.func @gpt_kernel(%arg0: i32, %arg1: i32, %arg2: memref<16x1xi32, #tpu.memory_space<vmem>>, %arg3: memref<64x32xbf16, #tpu.memory_space<vmem>>, %arg4: memref<8x32xf32, #tpu.memory_space<vmem>>, %arg5: memref<32x128xbf16, #tpu.memory_space<vmem>>, %arg6: memref<1x6x32xf32, #tpu.memory_space<vmem>>, %arg7: memref<1x32x96xbf16, #tpu.memory_space<vmem>>, %arg8: memref<1x1x96xf32, #tpu.memory_space<vmem>>, %arg9: memref<1x32x32xbf16, #tpu.memory_space<vmem>>, %arg10: memref<1x32x128xbf16, #tpu.memory_space<vmem>>, %arg11: memref<1x1x128xf32, #tpu.memory_space<vmem>>, %arg12: memref<1x128x32xbf16, #tpu.memory_space<vmem>>, %arg13: memref<2x32xf32, #tpu.memory_space<vmem>>, %arg14: memref<1x8x128xf32, #tpu.memory_space<vmem>>, %arg15: memref<8x32xf32, #tpu.memory_space<vmem>>) attributes {dimension_semantics = [#tpu.dimension_semantics<parallel>, #tpu.dimension_semantics<arbitrary>], iteration_bounds = array<i64: 2, 2>, scalar_prefetch = 0 : i64, scratch_operands = 1 : i64, tpu.core_type = #tpu.core_type<tc>, window_params = [{pipeline_mode = #tpu.pipeline_mode<synchronous>, transform_indices = @transform_0, window_bounds = array<i64: 16, 1>}, {pipeline_mode = #tpu.pipeline_mode<synchronous>, transform_indices = @transform_1, window_bounds = array<i64: 64, 32>}, {pipeline_mode = #tpu.pipeline_mode<synchronous>, transform_indices = @transform_2, window_bounds = array<i64: 8, 32>}, {pipeline_mode = #tpu.pipeline_mode<synchronous>, transform_indices = @transform_3, window_bounds = array<i64: 32, 128>}, {transform_indices = @transform_4, window_bounds = array<i64: 1, 6, 32>}, {transform_indices = @transform_5, window_bounds = array<i64: 1, 32, 96>}, {transform_indices = @transform_6, window_bounds = array<i64: 1, 1, 96>}, {transform_indices = @transform_7, window_bounds = array<i64: 1, 32, 32>}, {transform_indices = @transform_8, window_bounds = array<i64: 1, 32, 128>}, {transform_indices = @transform_9, window_bounds = array<i64: 1, 1, 128>}, {transform_indices = @transform_10, window_bounds = array<i64: 1, 128, 32>}, {pipeline_mode = #tpu.pipeline_mode<synchronous>, transform_indices = @transform_11, window_bounds = array<i64: 2, 32>}, {transform_indices = @transform_12, window_bounds = array<i64: 1, 8, 128>}]} {
    %c0_i32 = arith.constant 0 : i32
    %0 = arith.cmpi eq, %arg1, %c0_i32 : i32
    %1 = arith.extui %0 : i1 to i32
    %c0_i32_0 = arith.constant 0 : i32
    %2 = arith.cmpi ne, %1, %c0_i32_0 : i32
    scf.if %2 {
      %c8_i32 = arith.constant 8 : i32
      %144 = arith.muli %arg0, %c8_i32 : i32
      %145 = tpu.assume_multiple %144, 8 : i32
      %146 = arith.index_cast %145 : i32 to index
      %c0_53 = arith.constant 0 : index
      %147 = vector.load %arg2[%146, %c0_53] : memref<16x1xi32, #tpu.memory_space<vmem>>, vector<8x1xi32>
      %148 = tpu.iota {dimensions = array<i32: 1>} : vector<8x64xi32>
      %149 = vector.broadcast %147 : vector<8x1xi32> to vector<8x64xi32>
      %150 = arith.cmpi eq, %148, %149 : vector<8x64xi32>
      %151 = arith.extui %150 : vector<8x64xi1> to vector<8x64xi32>
      %152 = arith.sitofp %151 : vector<8x64xi32> to vector<8x64xf32>
      %153 = arith.truncf %152 : vector<8x64xf32> to vector<8x64xbf16>
      %c0_54 = arith.constant 0 : index
      %c0_55 = arith.constant 0 : index
      %154 = vector.load %arg3[%c0_54, %c0_55] : memref<64x32xbf16, #tpu.memory_space<vmem>>, vector<64x32xbf16>
      %cst_56 = arith.constant dense<0.000000e+00> : vector<8x32xf32>
      %155 = tpu.matmul %153, %154, %cst_56 {dimension_numbers = #tpu.dot_dimension_numbers<[1], [0], [0], [1], [0, 0, 1, 1], [], []>} : vector<8x64xbf16>, vector<64x32xbf16>, vector<8x32xf32> -> vector<8x32xf32>
      %c0_57 = arith.constant 0 : index
      %c0_58 = arith.constant 0 : index
      %156 = vector.load %arg4[%c0_57, %c0_58] : memref<8x32xf32, #tpu.memory_space<vmem>>, vector<8x32xf32>
      %157 = arith.addf %155, %156 : vector<8x32xf32>
      %c0_59 = arith.constant 0 : index
      %c0_60 = arith.constant 0 : index
      %158 = vector.load %arg15[%c0_59, %c0_60] : memref<8x32xf32, #tpu.memory_space<vmem>>, vector<8x32xf32>
      tpu.vector_store %arg15[%c0_59, %c0_60], %157 {strides = array<i32>} : memref<8x32xf32, #tpu.memory_space<vmem>>, vector<8x32xf32>,
    } else {
    }
    %c0 = arith.constant 0 : index
    %c0_1 = arith.constant 0 : index
    %3 = vector.load %arg15[%c0, %c0_1] : memref<8x32xf32, #tpu.memory_space<vmem>>, vector<8x32xf32>
    %c0_2 = arith.constant 0 : index
    %c0_3 = arith.constant 0 : index
    %c0_4 = arith.constant 0 : index
    %4 = vector.load %arg6[%c0_2, %c0_3, %c0_4] : memref<1x6x32xf32, #tpu.memory_space<vmem>>, vector<1x6x32xf32>
    %5 = vector.shape_cast %4 : vector<1x6x32xf32> to vector<6x32xf32>
    %6 = vector.extract_strided_slice %5 {offsets = [0, 0], sizes = [1, 32], strides = [1, 1]} : vector<6x32xf32> to vector<1x32xf32>
    %7 = vector.extract_strided_slice %5 {offsets = [1, 0], sizes = [1, 32], strides = [1, 1]} : vector<6x32xf32> to vector<1x32xf32>
    %8 = vector.extract_strided_slice %5 {offsets = [2, 0], sizes = [1, 32], strides = [1, 1]} : vector<6x32xf32> to vector<1x32xf32>
    %9 = vector.extract_strided_slice %5 {offsets = [3, 0], sizes = [1, 32], strides = [1, 1]} : vector<6x32xf32> to vector<1x32xf32>
    %10 = vector.extract_strided_slice %5 {offsets = [4, 0], sizes = [1, 32], strides = [1, 1]} : vector<6x32xf32> to vector<1x32xf32>
    %11 = vector.extract_strided_slice %5 {offsets = [5, 0], sizes = [1, 32], strides = [1, 1]} : vector<6x32xf32> to vector<1x32xf32>
    %cst = arith.constant dense<0.000000e+00> : vector<8xf32>
    %12 = vector.multi_reduction <add>, %3, %cst [1] : vector<8x32xf32> to vector<8xf32>
    %13 = vector.shape_cast %12 : vector<8xf32> to vector<8x1xf32>
    %cst_5 = arith.constant 3.200000e+01 : f32
    %14 = vector.broadcast %cst_5 : f32 to vector<8x1xf32>
    %15 = arith.divf %13, %14 : vector<8x1xf32>
    %16 = vector.broadcast %15 : vector<8x1xf32> to vector<8x32xf32>
    %17 = arith.subf %3, %16 : vector<8x32xf32>
    %18 = arith.mulf %17, %17 : vector<8x32xf32>
    %cst_6 = arith.constant dense<0.000000e+00> : vector<8xf32>
    %19 = vector.multi_reduction <add>, %18, %cst_6 [1] : vector<8x32xf32> to vector<8xf32>
    %20 = vector.shape_cast %19 : vector<8xf32> to vector<8x1xf32>
    %cst_7 = arith.constant 3.200000e+01 : f32
    %21 = vector.broadcast %cst_7 : f32 to vector<8x1xf32>
    %22 = arith.divf %20, %21 : vector<8x1xf32>
    %23 = vector.broadcast %15 : vector<8x1xf32> to vector<8x32xf32>
    %24 = arith.subf %3, %23 : vector<8x32xf32>
    %cst_8 = arith.constant 9.99999974E-6 : f32
    %25 = vector.broadcast %cst_8 : f32 to vector<8x1xf32>
    %26 = arith.addf %22, %25 : vector<8x1xf32>
    %27 = math.rsqrt %26 : vector<8x1xf32>
    %28 = vector.broadcast %27 : vector<8x1xf32> to vector<8x32xf32>
    %29 = arith.mulf %24, %28 : vector<8x32xf32>
    %30 = vector.broadcast %6 : vector<1x32xf32> to vector<8x32xf32>
    %31 = arith.mulf %29, %30 : vector<8x32xf32>
    %32 = vector.broadcast %7 : vector<1x32xf32> to vector<8x32xf32>
    %33 = arith.addf %31, %32 : vector<8x32xf32>
    %34 = arith.truncf %33 : vector<8x32xf32> to vector<8x32xbf16>
    %c0_9 = arith.constant 0 : index
    %c0_10 = arith.constant 0 : index
    %c0_11 = arith.constant 0 : index
    %35 = vector.load %arg7[%c0_9, %c0_10, %c0_11] : memref<1x32x96xbf16, #tpu.memory_space<vmem>>, vector<1x32x96xbf16>
    %36 = vector.shape_cast %35 : vector<1x32x96xbf16> to vector<32x96xbf16>
    %cst_12 = arith.constant dense<0.000000e+00> : vector<8x96xf32>
    %37 = tpu.matmul %34, %36, %cst_12 {dimension_numbers = #tpu.dot_dimension_numbers<[1], [0], [0], [1], [0, 0, 1, 1], [], []>} : vector<8x32xbf16>, vector<32x96xbf16>, vector<8x96xf32> -> vector<8x96xf32>
    %c0_13 = arith.constant 0 : index
    %c0_14 = arith.constant 0 : index
    %c0_15 = arith.constant 0 : index
    %38 = vector.load %arg8[%c0_13, %c0_14, %c0_15] : memref<1x1x96xf32, #tpu.memory_space<vmem>>, vector<1x1x96xf32>
    %39 = vector.shape_cast %38 : vector<1x1x96xf32> to vector<1x96xf32>
    %40 = vector.broadcast %39 : vector<1x96xf32> to vector<8x96xf32>
    %41 = arith.addf %37, %40 : vector<8x96xf32>
    %42 = arith.truncf %41 : vector<8x96xf32> to vector<8x96xbf16>
    %43 = tpu.iota {dimensions = array<i32: 0>} : vector<8x8xi32>
    %44 = tpu.iota {dimensions = array<i32: 1>} : vector<8x8xi32>
    %45 = arith.cmpi sge, %43, %44 : vector<8x8xi32>
    %46 = vector.extract_strided_slice %42 {offsets = [0, 0], sizes = [8, 16], strides = [1, 1]} : vector<8x96xbf16> to vector<8x16xbf16>
    %47 = vector.extract_strided_slice %42 {offsets = [0, 32], sizes = [8, 16], strides = [1, 1]} : vector<8x96xbf16> to vector<8x16xbf16>
    %48 = vector.extract_strided_slice %42 {offsets = [0, 64], sizes = [8, 16], strides = [1, 1]} : vector<8x96xbf16> to vector<8x16xbf16>
    %cst_16 = arith.constant dense<0.000000e+00> : vector<8x8xf32>
    %49 = tpu.matmul %46, %47, %cst_16 {dimension_numbers = #tpu.dot_dimension_numbers<[1], [1], [0], [0], [0, 0, 1, 0], [], []>} : vector<8x16xbf16>, vector<8x16xbf16>, vector<8x8xf32> -> vector<8x8xf32>
    %cst_17 = arith.constant -1.000000e+30 : f32
    %50 = vector.broadcast %cst_17 : f32 to vector<8x8xf32>
    %51 = arith.select %45, %49, %50 : vector<8x8xi1>, vector<8x8xf32>
    %cst_18 = arith.constant dense<0xFF800000> : vector<8xf32>
    %52 = vector.multi_reduction <maximumf>, %51, %cst_18 [1] : vector<8x8xf32> to vector<8xf32>
    %53 = vector.shape_cast %52 : vector<8xf32> to vector<8x1xf32>
    %54 = vector.broadcast %53 : vector<8x1xf32> to vector<8x8xf32>
    %55 = arith.subf %51, %54 : vector<8x8xf32>
    %56 = math.exp %55 : vector<8x8xf32>
    %cst_19 = arith.constant dense<0.000000e+00> : vector<8xf32>
    %57 = vector.multi_reduction <add>, %56, %cst_19 [1] : vector<8x8xf32> to vector<8xf32>
    %58 = vector.shape_cast %57 : vector<8xf32> to vector<8x1xf32>
    %59 = tpu.reciprocal %58 {approx = true} : vector<8x1xf32> -> vector<8x1xf32>
    %60 = vector.broadcast %59 : vector<8x1xf32> to vector<8x8xf32>
    %61 = arith.mulf %56, %60 : vector<8x8xf32>
    %62 = arith.truncf %61 : vector<8x8xf32> to vector<8x8xbf16>
    %cst_20 = arith.constant dense<0.000000e+00> : vector<8x16xf32>
    %63 = tpu.matmul %62, %48, %cst_20 {dimension_numbers = #tpu.dot_dimension_numbers<[1], [0], [0], [1], [0, 0, 1, 1], [], []>} : vector<8x8xbf16>, vector<8x16xbf16>, vector<8x16xf32> -> vector<8x16xf32>
    %64 = vector.extract_strided_slice %42 {offsets = [0, 16], sizes = [8, 16], strides = [1, 1]} : vector<8x96xbf16> to vector<8x16xbf16>
    %65 = vector.extract_strided_slice %42 {offsets = [0, 48], sizes = [8, 16], strides = [1, 1]} : vector<8x96xbf16> to vector<8x16xbf16>
    %66 = vector.extract_strided_slice %42 {offsets = [0, 80], sizes = [8, 16], strides = [1, 1]} : vector<8x96xbf16> to vector<8x16xbf16>
    %cst_21 = arith.constant dense<0.000000e+00> : vector<8x8xf32>
    %67 = tpu.matmul %64, %65, %cst_21 {dimension_numbers = #tpu.dot_dimension_numbers<[1], [1], [0], [0], [0, 0, 1, 0], [], []>} : vector<8x16xbf16>, vector<8x16xbf16>, vector<8x8xf32> -> vector<8x8xf32>
    %cst_22 = arith.constant -1.000000e+30 : f32
    %68 = vector.broadcast %cst_22 : f32 to vector<8x8xf32>
    %69 = arith.select %45, %67, %68 : vector<8x8xi1>, vector<8x8xf32>
    %cst_23 = arith.constant dense<0xFF800000> : vector<8xf32>
    %70 = vector.multi_reduction <maximumf>, %69, %cst_23 [1] : vector<8x8xf32> to vector<8xf32>
    %71 = vector.shape_cast %70 : vector<8xf32> to vector<8x1xf32>
    %72 = vector.broadcast %71 : vector<8x1xf32> to vector<8x8xf32>
    %73 = arith.subf %69, %72 : vector<8x8xf32>
    %74 = math.exp %73 : vector<8x8xf32>
    %cst_24 = arith.constant dense<0.000000e+00> : vector<8xf32>
    %75 = vector.multi_reduction <add>, %74, %cst_24 [1] : vector<8x8xf32> to vector<8xf32>
    %76 = vector.shape_cast %75 : vector<8xf32> to vector<8x1xf32>
    %77 = tpu.reciprocal %76 {approx = true} : vector<8x1xf32> -> vector<8x1xf32>
    %78 = vector.broadcast %77 : vector<8x1xf32> to vector<8x8xf32>
    %79 = arith.mulf %74, %78 : vector<8x8xf32>
    %80 = arith.truncf %79 : vector<8x8xf32> to vector<8x8xbf16>
    %cst_25 = arith.constant dense<0.000000e+00> : vector<8x16xf32>
    %81 = tpu.matmul %80, %66, %cst_25 {dimension_numbers = #tpu.dot_dimension_numbers<[1], [0], [0], [1], [0, 0, 1, 1], [], []>} : vector<8x8xbf16>, vector<8x16xbf16>, vector<8x16xf32> -> vector<8x16xf32>
    %82 = tpu.concatenate %63, %81 in 1 : vector<8x16xf32>, vector<8x16xf32> -> vector<8x32xf32>
    %83 = arith.truncf %82 : vector<8x32xf32> to vector<8x32xbf16>
    %c0_26 = arith.constant 0 : index
    %c0_27 = arith.constant 0 : index
    %c0_28 = arith.constant 0 : index
    %84 = vector.load %arg9[%c0_26, %c0_27, %c0_28] : memref<1x32x32xbf16, #tpu.memory_space<vmem>>, vector<1x32x32xbf16>
    %85 = vector.shape_cast %84 : vector<1x32x32xbf16> to vector<32x32xbf16>
    %cst_29 = arith.constant dense<0.000000e+00> : vector<8x32xf32>
    %86 = tpu.matmul %83, %85, %cst_29 {dimension_numbers = #tpu.dot_dimension_numbers<[1], [0], [0], [1], [0, 0, 1, 1], [], []>} : vector<8x32xbf16>, vector<32x32xbf16>, vector<8x32xf32> -> vector<8x32xf32>
    %87 = vector.broadcast %10 : vector<1x32xf32> to vector<8x32xf32>
    %88 = arith.addf %86, %87 : vector<8x32xf32>
    %89 = arith.addf %3, %88 : vector<8x32xf32>
    %cst_30 = arith.constant dense<0.000000e+00> : vector<8xf32>
    %90 = vector.multi_reduction <add>, %89, %cst_30 [1] : vector<8x32xf32> to vector<8xf32>
    %91 = vector.shape_cast %90 : vector<8xf32> to vector<8x1xf32>
    %cst_31 = arith.constant 3.200000e+01 : f32
    %92 = vector.broadcast %cst_31 : f32 to vector<8x1xf32>
    %93 = arith.divf %91, %92 : vector<8x1xf32>
    %94 = vector.broadcast %93 : vector<8x1xf32> to vector<8x32xf32>
    %95 = arith.subf %89, %94 : vector<8x32xf32>
    %96 = arith.mulf %95, %95 : vector<8x32xf32>
    %cst_32 = arith.constant dense<0.000000e+00> : vector<8xf32>
    %97 = vector.multi_reduction <add>, %96, %cst_32 [1] : vector<8x32xf32> to vector<8xf32>
    %98 = vector.shape_cast %97 : vector<8xf32> to vector<8x1xf32>
    %cst_33 = arith.constant 3.200000e+01 : f32
    %99 = vector.broadcast %cst_33 : f32 to vector<8x1xf32>
    %100 = arith.divf %98, %99 : vector<8x1xf32>
    %101 = vector.broadcast %93 : vector<8x1xf32> to vector<8x32xf32>
    %102 = arith.subf %89, %101 : vector<8x32xf32>
    %cst_34 = arith.constant 9.99999974E-6 : f32
    %103 = vector.broadcast %cst_34 : f32 to vector<8x1xf32>
    %104 = arith.addf %100, %103 : vector<8x1xf32>
    %105 = math.rsqrt %104 : vector<8x1xf32>
    %106 = vector.broadcast %105 : vector<8x1xf32> to vector<8x32xf32>
    %107 = arith.mulf %102, %106 : vector<8x32xf32>
    %108 = vector.broadcast %8 : vector<1x32xf32> to vector<8x32xf32>
    %109 = arith.mulf %107, %108 : vector<8x32xf32>
    %110 = vector.broadcast %9 : vector<1x32xf32> to vector<8x32xf32>
    %111 = arith.addf %109, %110 : vector<8x32xf32>
    %112 = arith.truncf %111 : vector<8x32xf32> to vector<8x32xbf16>
    %c0_35 = arith.constant 0 : index
    %c0_36 = arith.constant 0 : index
    %c0_37 = arith.constant 0 : index
    %113 = vector.load %arg10[%c0_35, %c0_36, %c0_37] : memref<1x32x128xbf16, #tpu.memory_space<vmem>>, vector<1x32x128xbf16>
    %114 = vector.shape_cast %113 : vector<1x32x128xbf16> to vector<32x128xbf16>
    %cst_38 = arith.constant dense<0.000000e+00> : vector<8x128xf32>
    %115 = tpu.matmul %112, %114, %cst_38 {dimension_numbers = #tpu.dot_dimension_numbers<[1], [0], [0], [1], [0, 0, 1, 1], [], []>} : vector<8x32xbf16>, vector<32x128xbf16>, vector<8x128xf32> -> vector<8x128xf32>
    %c0_39 = arith.constant 0 : index
    %c0_40 = arith.constant 0 : index
    %c0_41 = arith.constant 0 : index
    %116 = vector.load %arg11[%c0_39, %c0_40, %c0_41] : memref<1x1x128xf32, #tpu.memory_space<vmem>>, vector<1x1x128xf32>
    %117 = vector.shape_cast %116 : vector<1x1x128xf32> to vector<1x128xf32>
    %118 = vector.broadcast %117 : vector<1x128xf32> to vector<8x128xf32>
    %119 = arith.addf %115, %118 : vector<8x128xf32>
    %cst_42 = arith.constant 5.000000e-01 : f32
    %120 = vector.broadcast %cst_42 : f32 to vector<8x128xf32>
    %121 = arith.mulf %120, %119 : vector<8x128xf32>
    %cst_43 = arith.constant 4.471500e-02 : f32
    %122 = vector.broadcast %cst_43 : f32 to vector<8x128xf32>
    %123 = arith.mulf %122, %119 : vector<8x128xf32>
    %124 = arith.mulf %123, %119 : vector<8x128xf32>
    %125 = arith.mulf %124, %119 : vector<8x128xf32>
    %126 = arith.addf %119, %125 : vector<8x128xf32>
    %cst_44 = arith.constant 0.797884583 : f32
    %127 = vector.broadcast %cst_44 : f32 to vector<8x128xf32>
    %128 = arith.mulf %127, %126 : vector<8x128xf32>
    %129 = math.tanh %128 : vector<8x128xf32>
    %cst_45 = arith.constant 1.000000e+00 : f32
    %130 = vector.broadcast %cst_45 : f32 to vector<8x128xf32>
    %131 = arith.addf %130, %129 : vector<8x128xf32>
    %132 = arith.mulf %121, %131 : vector<8x128xf32>
    %133 = arith.truncf %132 : vector<8x128xf32> to vector<8x128xbf16>
    %c0_46 = arith.constant 0 : index
    %c0_47 = arith.constant 0 : index
    %c0_48 = arith.constant 0 : index
    %134 = vector.load %arg12[%c0_46, %c0_47, %c0_48] : memref<1x128x32xbf16, #tpu.memory_space<vmem>>, vector<1x128x32xbf16>
    %135 = vector.shape_cast %134 : vector<1x128x32xbf16> to vector<128x32xbf16>
    %cst_49 = arith.constant dense<0.000000e+00> : vector<8x32xf32>
    %136 = tpu.matmul %133, %135, %cst_49 {dimension_numbers = #tpu.dot_dimension_numbers<[1], [0], [0], [1], [0, 0, 1, 1], [], []>} : vector<8x128xbf16>, vector<128x32xbf16>, vector<8x32xf32> -> vector<8x32xf32>
    %137 = vector.broadcast %11 : vector<1x32xf32> to vector<8x32xf32>
    %138 = arith.addf %136, %137 : vector<8x32xf32>
    %139 = arith.addf %89, %138 : vector<8x32xf32>
    %c0_50 = arith.constant 0 : index
    %c0_51 = arith.constant 0 : index
    %140 = vector.load %arg15[%c0_50, %c0_51] : memref<8x32xf32, #tpu.memory_space<vmem>>, vector<8x32xf32>
    tpu.vector_store %arg15[%c0_50, %c0_51], %139 {strides = array<i32>} : memref<8x32xf32, #tpu.memory_space<vmem>>, vector<8x32xf32>,
    %c1_i32 = arith.constant 1 : i32
    %141 = arith.cmpi eq, %arg1, %c1_i32 : i32
    %142 = arith.extui %141 : i1 to i32
    %c0_i32_52 = arith.constant 0 : i32
    %143 = arith.cmpi ne, %142, %c0_i32_52 : i32
    scf.if %143 {
      %c0_53 = arith.constant 0 : index
      %c0_54 = arith.constant 0 : index
      %144 = vector.load %arg13[%c0_53, %c0_54] : memref<2x32xf32, #tpu.memory_space<vmem>>, vector<1x32xf32>
      %c1 = arith.constant 1 : index
      %c0_55 = arith.constant 0 : index
      %145 = vector.load %arg13[%c1, %c0_55] : memref<2x32xf32, #tpu.memory_space<vmem>>, vector<1x32xf32>
      %cst_56 = arith.constant dense<0.000000e+00> : vector<8xf32>
      %146 = vector.multi_reduction <add>, %139, %cst_56 [1] : vector<8x32xf32> to vector<8xf32>
      %147 = vector.shape_cast %146 : vector<8xf32> to vector<8x1xf32>
      %cst_57 = arith.constant 3.200000e+01 : f32
      %148 = vector.broadcast %cst_57 : f32 to vector<8x1xf32>
      %149 = arith.divf %147, %148 : vector<8x1xf32>
      %150 = vector.broadcast %149 : vector<8x1xf32> to vector<8x32xf32>
      %151 = arith.subf %139, %150 : vector<8x32xf32>
      %152 = arith.mulf %151, %151 : vector<8x32xf32>
      %cst_58 = arith.constant dense<0.000000e+00> : vector<8xf32>
      %153 = vector.multi_reduction <add>, %152, %cst_58 [1] : vector<8x32xf32> to vector<8xf32>
      %154 = vector.shape_cast %153 : vector<8xf32> to vector<8x1xf32>
      %cst_59 = arith.constant 3.200000e+01 : f32
      %155 = vector.broadcast %cst_59 : f32 to vector<8x1xf32>
      %156 = arith.divf %154, %155 : vector<8x1xf32>
      %157 = vector.broadcast %149 : vector<8x1xf32> to vector<8x32xf32>
      %158 = arith.subf %139, %157 : vector<8x32xf32>
      %cst_60 = arith.constant 9.99999974E-6 : f32
      %159 = vector.broadcast %cst_60 : f32 to vector<8x1xf32>
      %160 = arith.addf %156, %159 : vector<8x1xf32>
      %161 = math.rsqrt %160 : vector<8x1xf32>
      %162 = vector.broadcast %161 : vector<8x1xf32> to vector<8x32xf32>
      %163 = arith.mulf %158, %162 : vector<8x32xf32>
      %164 = vector.broadcast %144 : vector<1x32xf32> to vector<8x32xf32>
      %165 = arith.mulf %163, %164 : vector<8x32xf32>
      %166 = vector.broadcast %145 : vector<1x32xf32> to vector<8x32xf32>
      %167 = arith.addf %165, %166 : vector<8x32xf32>
      %168 = arith.truncf %167 : vector<8x32xf32> to vector<8x32xbf16>
      %c0_61 = arith.constant 0 : index
      %c0_62 = arith.constant 0 : index
      %169 = vector.load %arg5[%c0_61, %c0_62] : memref<32x128xbf16, #tpu.memory_space<vmem>>, vector<32x128xbf16>
      %cst_63 = arith.constant dense<0.000000e+00> : vector<8x128xf32>
      %170 = tpu.matmul %168, %169, %cst_63 {dimension_numbers = #tpu.dot_dimension_numbers<[1], [0], [0], [1], [0, 0, 1, 1], [], []>} : vector<8x32xbf16>, vector<32x128xbf16>, vector<8x128xf32> -> vector<8x128xf32>
      %c0_64 = arith.constant 0 : index
      %c0_65 = arith.constant 0 : index
      %c0_66 = arith.constant 0 : index
      %171 = vector.load %arg14[%c0_64, %c0_65, %c0_66] : memref<1x8x128xf32, #tpu.memory_space<vmem>>, vector<1x8x128xf32>
      %172 = vector.shape_cast %171 : vector<1x8x128xf32> to vector<8x128xf32>
      %173 = vector.shape_cast %170 : vector<8x128xf32> to vector<1x8x128xf32>
      tpu.vector_store %arg14[%c0_64, %c0_65, %c0_66], %173 {strides = array<i32>} : memref<1x8x128xf32, #tpu.memory_space<vmem>>, vector<1x8x128xf32>,
    } else {
    }
    return
  }
  func.func @transform_0(%arg0: i32, %arg1: i32) -> (i32, i32) {
    %c0_i32 = arith.constant 0 : i32
    %c0_i32_0 = arith.constant 0 : i32
    %c0_i32_1 = arith.constant 0 : i32
    return %c0_i32, %c0_i32_0 : i32, i32
  }
  func.func @transform_1(%arg0: i32, %arg1: i32) -> (i32, i32) {
    %c0_i32 = arith.constant 0 : i32
    %c0_i32_0 = arith.constant 0 : i32
    %c0_i32_1 = arith.constant 0 : i32
    return %c0_i32, %c0_i32_0 : i32, i32
  }
  func.func @transform_2(%arg0: i32, %arg1: i32) -> (i32, i32) {
    %c0_i32 = arith.constant 0 : i32
    %c0_i32_0 = arith.constant 0 : i32
    %c0_i32_1 = arith.constant 0 : i32
    return %c0_i32, %c0_i32_0 : i32, i32
  }
  func.func @transform_3(%arg0: i32, %arg1: i32) -> (i32, i32) {
    %c0_i32 = arith.constant 0 : i32
    %c0_i32_0 = arith.constant 0 : i32
    %c0_i32_1 = arith.constant 0 : i32
    return %c0_i32, %c0_i32_0 : i32, i32
  }
  func.func @transform_4(%arg0: i32, %arg1: i32) -> (i32, i32, i32) {
    %c0_i32 = arith.constant 0 : i32
    %c0_i32_0 = arith.constant 0 : i32
    %c0_i32_1 = arith.constant 0 : i32
    return %arg1, %c0_i32, %c0_i32_0 : i32, i32, i32
  }
  func.func @transform_5(%arg0: i32, %arg1: i32) -> (i32, i32, i32) {
    %c0_i32 = arith.constant 0 : i32
    %c0_i32_0 = arith.constant 0 : i32
    %c0_i32_1 = arith.constant 0 : i32
    return %arg1, %c0_i32, %c0_i32_0 : i32, i32, i32
  }
  func.func @transform_6(%arg0: i32, %arg1: i32) -> (i32, i32, i32) {
    %c0_i32 = arith.constant 0 : i32
    %c0_i32_0 = arith.constant 0 : i32
    %c0_i32_1 = arith.constant 0 : i32
    return %arg1, %c0_i32, %c0_i32_0 : i32, i32, i32
  }
  func.func @transform_7(%arg0: i32, %arg1: i32) -> (i32, i32, i32) {
    %c0_i32 = arith.constant 0 : i32
    %c0_i32_0 = arith.constant 0 : i32
    %c0_i32_1 = arith.constant 0 : i32
    return %arg1, %c0_i32, %c0_i32_0 : i32, i32, i32
  }
  func.func @transform_8(%arg0: i32, %arg1: i32) -> (i32, i32, i32) {
    %c0_i32 = arith.constant 0 : i32
    %c0_i32_0 = arith.constant 0 : i32
    %c0_i32_1 = arith.constant 0 : i32
    return %arg1, %c0_i32, %c0_i32_0 : i32, i32, i32
  }
  func.func @transform_9(%arg0: i32, %arg1: i32) -> (i32, i32, i32) {
    %c0_i32 = arith.constant 0 : i32
    %c0_i32_0 = arith.constant 0 : i32
    %c0_i32_1 = arith.constant 0 : i32
    return %arg1, %c0_i32, %c0_i32_0 : i32, i32, i32
  }
  func.func @transform_10(%arg0: i32, %arg1: i32) -> (i32, i32, i32) {
    %c0_i32 = arith.constant 0 : i32
    %c0_i32_0 = arith.constant 0 : i32
    %c0_i32_1 = arith.constant 0 : i32
    return %arg1, %c0_i32, %c0_i32_0 : i32, i32, i32
  }
  func.func @transform_11(%arg0: i32, %arg1: i32) -> (i32, i32) {
    %c0_i32 = arith.constant 0 : i32
    %c0_i32_0 = arith.constant 0 : i32
    %c0_i32_1 = arith.constant 0 : i32
    return %c0_i32, %c0_i32_0 : i32, i32
  }
  func.func @transform_12(%arg0: i32, %arg1: i32) -> (i32, i32, i32) {
    %c0_i32 = arith.constant 0 : i32
    %c0_i32_0 = arith.constant 0 : i32
    %c0_i32_1 = arith.constant 0 : i32
    return %arg0, %c0_i32, %c0_i32_0 : i32, i32, i32
  }
}

</mosaic_0001>

<llo_original>
// kernel: gpt_forward.1
$region0: #{gpt_forward.1}
  #allocation0 [shape = 'u32[]', space=smem, size = 0x4, offset = 0x4, fixed_abs, tag = 'smem constant byte address 0x4 - core index']
  #allocation1 [shape = 'u32[144,128]{1,0:T(1,128)}', space=vmem, size = 0x12000, scoped, tag = 'internal scratch']
  #allocation2 [shape = 'f32[8,32]{1,0:T(8,128)}', space=vmem, size = 0x1000, scoped, tag = 'scratch operand']
  %s0 = inlined_call_operand.vmem [shape: s32[16,1], index: 0, kind: input, shape index: {}]
  %s1 = inlined_call_operand.vmem [shape: bf16[64,32], index: 1, kind: input, shape index: {}]
  %s2 = inlined_call_operand.vmem [shape: f32[8,32], index: 2, kind: input, shape index: {}]
  %s3 = inlined_call_operand.vmem [shape: bf16[32,128], index: 3, kind: input, shape index: {}]
  %s4 = inlined_call_operand.vmem [shape: f32[2,6,32], index: 4, kind: input, shape index: {}]
  %s5 = inlined_call_operand.vmem [shape: bf16[2,32,96], index: 5, kind: input, shape index: {}]
  %s6 = inlined_call_operand.vmem [shape: f32[2,1,96], index: 6, kind: input, shape index: {}]
  %s7 = inlined_call_operand.vmem [shape: bf16[2,32,32], index: 7, kind: input, shape index: {}]
  %s8 = inlined_call_operand.vmem [shape: bf16[2,32,128], index: 8, kind: input, shape index: {}]
  %s9 = inlined_call_operand.vmem [shape: f32[2,1,128], index: 9, kind: input, shape index: {}]
  %s10 = inlined_call_operand.vmem [shape: bf16[2,128,32], index: 10, kind: input, shape index: {}]
  %s11 = inlined_call_operand.vmem [shape: f32[2,32], index: 11, kind: input, shape index: {}]
  %s12 = inlined_call_operand.vmem [shape: f32[2,8,128], index: 12, kind: output, shape index: {}]
  %s13 = sld [smem:[#allocation0]]
  $region89: #{gpt_forward.1} parent=0
    _
  %s15 = ssub.s32 1, %s13
  %s16 = scalar_select 0, %s15, %s13
  loop: start=0, step=1, limit=6
  $region2: #{gpt_forward.1} parent=0 // loop_pre_header
    _
  $region3: #{gpt_forward.1} parent=0 // loop_header
    %s18 = sphi 0, %s22
    %p19 = scmp.ge.s32.totalorder %s18, 6
    %s25 = sphi 0, %s37
    %s26 = sphi 0, %s33
    %s27 = sphi 0, %s25
    %s28 = sphi 0, %s26
    %s29 = sphi 0, %s27
    %s30 = sphi 0, %s28
    %s38 = sphi 0, %s38
    %s40 = sphi 0, %s38
    %s41 = sphi 0, %s40
    %s55 = sphi 0, %s41
    %s59 = sphi 0, %s59
    %s61 = sphi 0, %s59
    %s62 = sphi 0, %s61
    %s76 = sphi 0, %s62
    %s80 = sphi 0, %s80
    %s82 = sphi 0, %s80
    %s83 = sphi 0, %s82
    %s97 = sphi 0, %s83
    %s101 = sphi 0, %s101
    %s103 = sphi 0, %s101
    %s104 = sphi 0, %s103
    %s118 = sphi 0, %s104
    %s124 = sphi 0, %s126
    %s127 = sphi 0, %s124
    %s128 = sphi 0, %s127
    %s144 = sphi 0, %s128
    %s150 = sphi 0, %s152
    %s153 = sphi 0, %s150
    %s154 = sphi 0, %s153
    %s170 = sphi 0, %s154
    %s176 = sphi 0, %s178
    %s179 = sphi 0, %s176
    %s180 = sphi 0, %s179
    %s196 = sphi 0, %s180
    %s202 = sphi 0, %s204
    %s205 = sphi 0, %s202
    %s206 = sphi 0, %s205
    %s222 = sphi 0, %s206
    %s228 = sphi 0, %s230
    %s231 = sphi 0, %s228
    %s232 = sphi 0, %s231
    %s248 = sphi 0, %s232
    %s254 = sphi 0, %s256
    %s257 = sphi 0, %s254
    %s258 = sphi 0, %s257
    %s274 = sphi 0, %s258
    %s280 = sphi 0, %s282
    %s283 = sphi 0, %s280
    %s284 = sphi 0, %s283
    %s300 = sphi 0, %s284
    %s304 = sphi 0, %s304
    %s306 = sphi 0, %s304
    %s307 = sphi 0, %s306
    %s321 = sphi 0, %s307
    %s327 = sphi 0, %s329
    %s330 = sphi 0, %s327
    %s331 = sphi 0, %s330
    %s347 = sphi 0, %s331
  $region4: #{gpt_forward.1} parent=0 // loop_header_branch
    %21 = sbr.rel (%p19) target = $region8
  $region5: #{gpt_forward.1} parent=0 // loop_body
    %s23 = ssub.s32 %s18, 1
    %s24 = ssub.s32 %s18, 2
    %s31 = sadd.s32 1, %s26
    %p32 = scmp.ge.s32.totalorder %s31, 2
    %s33 = scalar_select %p32, 0, %s31
    %s34 = sadd.s32 1, %s25
    %s35 = scalar_select %p32, %s34, %s25
    %p36 = scmp.ge.s32.totalorder %s35, 2
    %s37 = scalar_select %p36, 0, %s35
    %s39 = sadd.s32 %s38, 1
    %p42 = scmp.eq.s32.totalorder %s18, 3
    %p43 = scmp.ne.s32.totalorder %s38, %s40
    %p44 = scmp.eq.s32.totalorder %s18, 0
    %p45 = por %p43, %p44
    %p46 = scmp.ne.s32.totalorder %s38, %s40
    %p47 = scmp.eq.s32.totalorder %s23, 3
    %p48 = por %p46, %p47
    %p49 = scmp.ne.s32.totalorder %s40, %s41
    %p50 = scmp.eq.s32.totalorder %s23, 0
    %p51 = por %p49, %p50
    %p52 = scmp.ne.s32.totalorder %s40, %s41
    %p53 = scmp.eq.s32.totalorder %s24, 3
    %p54 = por %p52, %p53
    %p56 = scmp.ne.s32.totalorder %s41, %s55
    %p57 = scmp.eq.s32.totalorder %s24, 0
    %p58 = por %p56, %p57
    %s60 = sadd.s32 %s59, 1
    %p63 = scmp.eq.s32.totalorder %s18, 3
    %p64 = scmp.ne.s32.totalorder %s59, %s61
    %p65 = scmp.eq.s32.totalorder %s18, 0
    %p66 = por %p64, %p65
    %p67 = scmp.ne.s32.totalorder %s59, %s61
    %p68 = scmp.eq.s32.totalorder %s23, 3
    %p69 = por %p67, %p68
    %p70 = scmp.ne.s32.totalorder %s61, %s62
    %p71 = scmp.eq.s32.totalorder %s23, 0
    %p72 = por %p70, %p71
    %p73 = scmp.ne.s32.totalorder %s61, %s62
    %p74 = scmp.eq.s32.totalorder %s24, 3
    %p75 = por %p73, %p74
    %p77 = scmp.ne.s32.totalorder %s62, %s76
    %p78 = scmp.eq.s32.totalorder %s24, 0
    %p79 = por %p77, %p78
    %s81 = sadd.s32 %s80, 1
    %p84 = scmp.eq.s32.totalorder %s18, 3
    %p85 = scmp.ne.s32.totalorder %s80, %s82
    %p86 = scmp.eq.s32.totalorder %s18, 0
    %p87 = por %p85, %p86
    %p88 = scmp.ne.s32.totalorder %s80, %s82
    %p89 = scmp.eq.s32.totalorder %s23, 3
    %p90 = por %p88, %p89
    %p91 = scmp.ne.s32.totalorder %s82, %s83
    %p92 = scmp.eq.s32.totalorder %s23, 0
    %p93 = por %p91, %p92
    %p94 = scmp.ne.s32.totalorder %s82, %s83
    %p95 = scmp.eq.s32.totalorder %s24, 3
    %p96 = por %p94, %p95
    %p98 = scmp.ne.s32.totalorder %s83, %s97
    %p99 = scmp.eq.s32.totalorder %s24, 0
    %p100 = por %p98, %p99
    %s102 = sadd.s32 %s101, 1
    %p105 = scmp.eq.s32.totalorder %s18, 3
    %p106 = scmp.ne.s32.totalorder %s101, %s103
    %p107 = scmp.eq.s32.totalorder %s18, 0
    %p108 = por %p106, %p107
    %p109 = scmp.ne.s32.totalorder %s101, %s103
    %p110 = scmp.eq.s32.totalorder %s23, 3
    %p111 = por %p109, %p110
    %p112 = scmp.ne.s32.totalorder %s103, %s104
    %p113 = scmp.eq.s32.totalorder %s23, 0
    %p114 = por %p112, %p113
    %p115 = scmp.ne.s32.totalorder %s103, %s104
    %p116 = scmp.eq.s32.totalorder %s24, 3
    %p117 = por %p115, %p116
    %p119 = scmp.ne.s32.totalorder %s104, %s118
    %p120 = scmp.eq.s32.totalorder %s24, 0
    %p121 = por %p119, %p120
    %s122 = ssub.s32 %s26, %s33
    %p123 = scmp.eq.s32.totalorder %s122, 0
    %s125 = sadd.s32 %s124, 1
    %s126 = scalar_select %p123, %s124, %s125
    %p129 = pneg %p123
    %p130 = scmp.eq.s32.totalorder %s18, 3
    %p131 = por %p129, %p130
    %p132 = scmp.ne.s32.totalorder %s124, %s127
    %p133 = scmp.eq.s32.totalorder %s18, 0
    %p134 = por %p132, %p133
    %p135 = scmp.ne.s32.totalorder %s124, %s127
    %p136 = scmp.eq.s32.totalorder %s23, 3
    %p137 = por %p135, %p136
    %p138 = scmp.ne.s32.totalorder %s127, %s128
    %p139 = scmp.eq.s32.totalorder %s23, 0
    %p140 = por %p138, %p139
    %p141 = scmp.ne.s32.totalorder %s127, %s128
    %p142 = scmp.eq.s32.totalorder %s24, 3
    %p143 = por %p141, %p142
    %p145 = scmp.ne.s32.totalorder %s128, %s144
    %p146 = scmp.eq.s32.totalorder %s24, 0
    %p147 = por %p145, %p146
    %s148 = ssub.s32 %s26, %s33
    %p149 = scmp.eq.s32.totalorder %s148, 0
    %s151 = sadd.s32 %s150, 1
    %s152 = scalar_select %p149, %s150, %s151
    %p155 = pneg %p149
    %p156 = scmp.eq.s32.totalorder %s18, 3
    %p157 = por %p155, %p156
    %p158 = scmp.ne.s32.totalorder %s150, %s153
    %p159 = scmp.eq.s32.totalorder %s18, 0
    %p160 = por %p158, %p159
    %p161 = scmp.ne.s32.totalorder %s150, %s153
    %p162 = scmp.eq.s32.totalorder %s23, 3
    %p163 = por %p161, %p162
    %p164 = scmp.ne.s32.totalorder %s153, %s154
    %p165 = scmp.eq.s32.totalorder %s23, 0
    %p166 = por %p164, %p165
    %p167 = scmp.ne.s32.totalorder %s153, %s154
    %p168 = scmp.eq.s32.totalorder %s24, 3
    %p169 = por %p167, %p168
    %p171 = scmp.ne.s32.totalorder %s154, %s170
    %p172 = scmp.eq.s32.totalorder %s24, 0
    %p173 = por %p171, %p172
    %s174 = ssub.s32 %s26, %s33
    %p175 = scmp.eq.s32.totalorder %s174, 0
    %s177 = sadd.s32 %s176, 1
    %s178 = scalar_select %p175, %s176, %s177
    %p181 = pneg %p175
    %p182 = scmp.eq.s32.totalorder %s18, 3
    %p183 = por %p181, %p182
    %p184 = scmp.ne.s32.totalorder %s176, %s179
    %p185 = scmp.eq.s32.totalorder %s18, 0
    %p186 = por %p184, %p185
    %p187 = scmp.ne.s32.totalorder %s176, %s179
    %p188 = scmp.eq.s32.totalorder %s23, 3
    %p189 = por %p187, %p188
    %p190 = scmp.ne.s32.totalorder %s179, %s180
    %p191 = scmp.eq.s32.totalorder %s23, 0
    %p192 = por %p190, %p191
    %p193 = scmp.ne.s32.totalorder %s179, %s180
    %p194 = scmp.eq.s32.totalorder %s24, 3
    %p195 = por %p193, %p194
    %p197 = scmp.ne.s32.totalorder %s180, %s196
    %p198 = scmp.eq.s32.totalorder %s24, 0
    %p199 = por %p197, %p198
    %s200 = ssub.s32 %s26, %s33
    %p201 = scmp.eq.s32.totalorder %s200, 0
    %s203 = sadd.s32 %s202, 1
    %s204 = scalar_select %p201, %s202, %s203
    %p207 = pneg %p201
    %p208 = scmp.eq.s32.totalorder %s18, 3
    %p209 = por %p207, %p208
    %p210 = scmp.ne.s32.totalorder %s202, %s205
    %p211 = scmp.eq.s32.totalorder %s18, 0
    %p212 = por %p210, %p211
    %p213 = scmp.ne.s32.totalorder %s202, %s205
    %p214 = scmp.eq.s32.totalorder %s23, 3
    %p215 = por %p213, %p214
    %p216 = scmp.ne.s32.totalorder %s205, %s206
    %p217 = scmp.eq.s32.totalorder %s23, 0
    %p218 = por %p216, %p217
    %p219 = scmp.ne.s32.totalorder %s205, %s206
    %p220 = scmp.eq.s32.totalorder %s24, 3
    %p221 = por %p219, %p220
    %p223 = scmp.ne.s32.totalorder %s206, %s222
    %p224 = scmp.eq.s32.totalorder %s24, 0
    %p225 = por %p223, %p224
    %s226 = ssub.s32 %s26, %s33
    %p227 = scmp.eq.s32.totalorder %s226, 0
    %s229 = sadd.s32 %s228, 1
    %s230 = scalar_select %p227, %s228, %s229
    %p233 = pneg %p227
    %p234 = scmp.eq.s32.totalorder %s18, 3
    %p235 = por %p233, %p234
    %p236 = scmp.ne.s32.totalorder %s228, %s231
    %p237 = scmp.eq.s32.totalorder %s18, 0
    %p238 = por %p236, %p237
    %p239 = scmp.ne.s32.totalorder %s228, %s231
    %p240 = scmp.eq.s32.totalorder %s23, 3
    %p241 = por %p239, %p240
    %p242 = scmp.ne.s32.totalorder %s231, %s232
    %p243 = scmp.eq.s32.totalorder %s23, 0
    %p244 = por %p242, %p243
    %p245 = scmp.ne.s32.totalorder %s231, %s232
    %p246 = scmp.eq.s32.totalorder %s24, 3
    %p247 = por %p245, %p246
    %p249 = scmp.ne.s32.totalorder %s232, %s248
    %p250 = scmp.eq.s32.totalorder %s24, 0
    %p251 = por %p249, %p250
    %s252 = ssub.s32 %s26, %s33
    %p253 = scmp.eq.s32.totalorder %s252, 0
    %s255 = sadd.s32 %s254, 1
    %s256 = scalar_select %p253, %s254, %s255
    %p259 = pneg %p253
    %p260 = scmp.eq.s32.totalorder %s18, 3
    %p261 = por %p259, %p260
    %p262 = scmp.ne.s32.totalorder %s254, %s257
    %p263 = scmp.eq.s32.totalorder %s18, 0
    %p264 = por %p262, %p263
    %p265 = scmp.ne.s32.totalorder %s254, %s257
    %p266 = scmp.eq.s32.totalorder %s23, 3
    %p267 = por %p265, %p266
    %p268 = scmp.ne.s32.totalorder %s257, %s258
    %p269 = scmp.eq.s32.totalorder %s23, 0
    %p270 = por %p268, %p269
    %p271 = scmp.ne.s32.totalorder %s257, %s258
    %p272 = scmp.eq.s32.totalorder %s24, 3
    %p273 = por %p271, %p272
    %p275 = scmp.ne.s32.totalorder %s258, %s274
    %p276 = scmp.eq.s32.totalorder %s24, 0
    %p277 = por %p275, %p276
    %s278 = ssub.s32 %s26, %s33
    %p279 = scmp.eq.s32.totalorder %s278, 0
    %s281 = sadd.s32 %s280, 1
    %s282 = scalar_select %p279, %s280, %s281
    %p285 = pneg %p279
    %p286 = scmp.eq.s32.totalorder %s18, 3
    %p287 = por %p285, %p286
    %p288 = scmp.ne.s32.totalorder %s280, %s283
    %p289 = scmp.eq.s32.totalorder %s18, 0
    %p290 = por %p288, %p289
    %p291 = scmp.ne.s32.totalorder %s280, %s283
    %p292 = scmp.eq.s32.totalorder %s23, 3
    %p293 = por %p291, %p292
    %p294 = scmp.ne.s32.totalorder %s283, %s284
    %p295 = scmp.eq.s32.totalorder %s23, 0
    %p296 = por %p294, %p295
    %p297 = scmp.ne.s32.totalorder %s283, %s284
    %p298 = scmp.eq.s32.totalorder %s24, 3
    %p299 = por %p297, %p298
    %p301 = scmp.ne.s32.totalorder %s284, %s300
    %p302 = scmp.eq.s32.totalorder %s24, 0
    %p303 = por %p301, %p302
    %s305 = sadd.s32 %s304, 1
    %p308 = scmp.eq.s32.totalorder %s18, 3
    %p309 = scmp.ne.s32.totalorder %s304, %s306
    %p310 = scmp.eq.s32.totalorder %s18, 0
    %p311 = por %p309, %p310
    %p312 = scmp.ne.s32.totalorder %s304, %s306
    %p313 = scmp.eq.s32.totalorder %s23, 3
    %p314 = por %p312, %p313
    %p315 = scmp.ne.s32.totalorder %s306, %s307
    %p316 = scmp.eq.s32.totalorder %s23, 0
    %p317 = por %p315, %p316
    %p318 = scmp.ne.s32.totalorder %s306, %s307
    %p319 = scmp.eq.s32.totalorder %s24, 3
    %p320 = por %p318, %p319
    %p322 = scmp.ne.s32.totalorder %s307, %s321
    %p323 = scmp.eq.s32.totalorder %s24, 0
    %p324 = por %p322, %p323
    %s325 = ssub.s32 %s25, %s37
    %p326 = scmp.eq.s32.totalorder %s325, 0
    %s328 = sadd.s32 %s327, 1
    %s329 = scalar_select %p326, %s327, %s328
    %p332 = pneg %p326
    %p333 = scmp.eq.s32.totalorder %s18, 3
    %p334 = por %p332, %p333
    %p335 = scmp.ne.s32.totalorder %s327, %s330
    %p336 = scmp.eq.s32.totalorder %s18, 0
    %p337 = por %p335, %p336
    %p338 = scmp.ne.s32.totalorder %s327, %s330
    %p339 = scmp.eq.s32.totalorder %s23, 3
    %p340 = por %p338, %p339
    %p341 = scmp.ne.s32.totalorder %s330, %s331
    %p342 = scmp.eq.s32.totalorder %s23, 0
    %p343 = por %p341, %p342
    %p344 = scmp.ne.s32.totalorder %s330, %s331
    %p345 = scmp.eq.s32.totalorder %s24, 3
    %p346 = por %p344, %p345
    %p348 = scmp.ne.s32.totalorder %s331, %s347
    %p349 = scmp.eq.s32.totalorder %s24, 0
    %p350 = por %p348, %p349
    %p351 = scmp.le.s32.totalorder 1, %s18
    %p352 = scmp.lt.s32.totalorder %s18, 5
    %p353 = pnand %p351, %p352
    %p354 = pneg %p353
    // Predicated region
    $region9: #{gpt_forward.1} parent=5 // pred_check
      _
    $region10: #{gpt_forward.1} parent=5 // pred_check_branch
      %356 = sbr.rel (%p353) target = $region12
    $region11: #{gpt_forward.1} parent=5 // pred_region
      %s357 = ssub.s32 %s18, 1
      // Predicated region
      $region13: #{gpt_forward.1} parent=11 // pred_check
        %p358 = pneg %p51
      $region14: #{gpt_forward.1} parent=11 // pred_check_branch
        %360 = sbr.rel (%p358) target = $region16
      $region15: #{gpt_forward.1} parent=11 // pred_region
        _
      $region16: #{gpt_forward.1} parent=11 // pred_fallthru
        _
      // Predicated region
      $region17: #{gpt_forward.1} parent=11 // pred_check
        %p361 = pneg %p72
      $region18: #{gpt_forward.1} parent=11 // pred_check_branch
        %363 = sbr.rel (%p361) target = $region20
      $region19: #{gpt_forward.1} parent=11 // pred_region
        _
      $region20: #{gpt_forward.1} parent=11 // pred_fallthru
        _
      // Predicated region
      $region21: #{gpt_forward.1} parent=11 // pred_check
        %p364 = pneg %p93
      $region22: #{gpt_forward.1} parent=11 // pred_check_branch
        %366 = sbr.rel (%p364) target = $region24
      $region23: #{gpt_forward.1} parent=11 // pred_region
        _
      $region24: #{gpt_forward.1} parent=11 // pred_fallthru
        _
      // Predicated region
      $region25: #{gpt_forward.1} parent=11 // pred_check
        %p367 = pneg %p114
      $region26: #{gpt_forward.1} parent=11 // pred_check_branch
        %369 = sbr.rel (%p367) target = $region28
      $region27: #{gpt_forward.1} parent=11 // pred_region
        _
      $region28: #{gpt_forward.1} parent=11 // pred_fallthru
        _
      // Predicated region
      $region29: #{gpt_forward.1} parent=11 // pred_check
        %p370 = pneg %p317
      $region30: #{gpt_forward.1} parent=11 // pred_check_branch
        %372 = sbr.rel (%p370) target = $region32
      $region31: #{gpt_forward.1} parent=11 // pred_region
        _
      $region32: #{gpt_forward.1} parent=11 // pred_fallthru
        _
    $region12: #{gpt_forward.1} parent=5 // pred_fallthru
      _
    %p373 = scmp.lt.s32.totalorder %s18, 4
    // Predicated region
    $region33: #{gpt_forward.1} parent=5 // pred_check
      %p374 = pneg %p373
    $region34: #{gpt_forward.1} parent=5 // pred_check_branch
      %376 = sbr.rel (%p374) target = $region36
    $region35: #{gpt_forward.1} parent=5 // pred_region
      // Predicated region
      $region37: #{gpt_forward.1} parent=35 // pred_check
        %p377 = pneg %p134
      $region38: #{gpt_forward.1} parent=35 // pred_check_branch
        %379 = sbr.rel (%p377) target = $region40
      $region39: #{gpt_forward.1} parent=35 // pred_region
        %p380 = scmp.lt.s32.totalorder %s26, 1
        %s381 = scalar_select %p380, %s26, 1
        %s382 = smul.addr %s381, 8
        %s383 = scalar_lea.vmem %s4, %s382
      $region40: #{gpt_forward.1} parent=35 // pred_fallthru
        _
      // Predicated region
      $region41: #{gpt_forward.1} parent=35 // pred_check
        %p384 = pneg %p160
      $region42: #{gpt_forward.1} parent=35 // pred_check_branch
        %386 = sbr.rel (%p384) target = $region44
      $region43: #{gpt_forward.1} parent=35 // pred_region
        %p387 = scmp.lt.s32.totalorder %s26, 1
        %s388 = scalar_select %p387, %s26, 1
        %s389 = smul.addr %s388, 4
        %s390 = smul.addr %s389, 4
        %s391 = scalar_lea.vmem %s5, %s390
      $region44: #{gpt_forward.1} parent=35 // pred_fallthru
        _
      // Predicated region
      $region45: #{gpt_forward.1} parent=35 // pred_check
        %p392 = pneg %p186
      $region46: #{gpt_forward.1} parent=35 // pred_check_branch
        %394 = sbr.rel (%p392) target = $region48
      $region47: #{gpt_forward.1} parent=35 // pred_region
        %p395 = scmp.lt.s32.totalorder %s26, 1
        %s396 = scalar_select %p395, %s26, 1
        %s397 = scalar_lea.vmem %s6, %s396
      $region48: #{gpt_forward.1} parent=35 // pred_fallthru
        _
      // Predicated region
      $region49: #{gpt_forward.1} parent=35 // pred_check
        %p398 = pneg %p212
      $region50: #{gpt_forward.1} parent=35 // pred_check_branch
        %400 = sbr.rel (%p398) target = $region52
      $region51: #{gpt_forward.1} parent=35 // pred_region
        %p401 = scmp.lt.s32.totalorder %s26, 1
        %s402 = scalar_select %p401, %s26, 1
        %s403 = smul.addr %s402, 4
        %s404 = smul.addr %s403, 4
        %s405 = scalar_lea.vmem %s7, %s404
      $region52: #{gpt_forward.1} parent=35 // pred_fallthru
        _
      // Predicated region
      $region53: #{gpt_forward.1} parent=35 // pred_check
        %p406 = pneg %p238
      $region54: #{gpt_forward.1} parent=35 // pred_check_branch
        %408 = sbr.rel (%p406) target = $region56
      $region55: #{gpt_forward.1} parent=35 // pred_region
        %p409 = scmp.lt.s32.totalorder %s26, 1
        %s410 = scalar_select %p409, %s26, 1
        %s411 = smul.addr %s410, 4
        %s412 = smul.addr %s411, 4
        %s413 = scalar_lea.vmem %s8, %s412
      $region56: #{gpt_forward.1} parent=35 // pred_fallthru
        _
      // Predicated region
      $region57: #{gpt_forward.1} parent=35 // pred_check
        %p414 = pneg %p264
      $region58: #{gpt_forward.1} parent=35 // pred_check_branch
        %416 = sbr.rel (%p414) target = $region60
      $region59: #{gpt_forward.1} parent=35 // pred_region
        %p417 = scmp.lt.s32.totalorder %s26, 1
        %s418 = scalar_select %p417, %s26, 1
        %s419 = scalar_lea.vmem %s9, %s418
      $region60: #{gpt_forward.1} parent=35 // pred_fallthru
        _
      // Predicated region
      $region61: #{gpt_forward.1} parent=35 // pred_check
        %p420 = pneg %p290
      $region62: #{gpt_forward.1} parent=35 // pred_check_branch
        %422 = sbr.rel (%p420) target = $region64
      $region63: #{gpt_forward.1} parent=35 // pred_region
        %p423 = scmp.lt.s32.totalorder %s26, 1
        %s424 = scalar_select %p423, %s26, 1
        %s425 = smul.addr %s424, 16
        %s426 = smul.addr %s425, 4
        %s427 = scalar_lea.vmem %s10, %s426
      $region64: #{gpt_forward.1} parent=35 // pred_fallthru
        _
    $region36: #{gpt_forward.1} parent=5 // pred_fallthru
      _
    %p428 = scmp.le.s32.totalorder 1, %s18
    %p429 = scmp.lt.s32.totalorder %s18, 5
    %p430 = pnand %p428, %p429
    %p431 = pneg %p430
    // Predicated region
    $region65: #{gpt_forward.1} parent=5 // pred_check
      _
    $region66: #{gpt_forward.1} parent=5 // pred_check_branch
      %433 = sbr.rel (%p430) target = $region68
    $region67: #{gpt_forward.1} parent=5 // pred_region
      %s434 = ssub.s32 %s18, 1
      %p435 = pneg %p51
      %p436 = pneg %p48
      %p437 = pneg %p72
      %p438 = pneg %p69
      %p439 = pneg %p93
      %p440 = pneg %p90
      %p441 = pneg %p114
      %p442 = pneg %p111
      %p443 = scmp.lt.s32.totalorder %s28, 1
      %s444 = scalar_select %p443, %s28, 1
      %s445 = smul.addr %s444, 8
      %s446 = scalar_lea.vmem %s4, %s445
      %p447 = pneg %p140
      %p448 = pneg %p137
      %p449 = scmp.lt.s32.totalorder %s28, 1
      %s450 = scalar_select %p449, %s28, 1
      %s451 = smul.addr %s450, 4
      %s452 = smul.addr %s451, 4
      %s453 = scalar_lea.vmem %s5, %s452
      %p454 = pneg %p166
      %p455 = pneg %p163
      %p456 = scmp.lt.s32.totalorder %s28, 1
      %s457 = scalar_select %p456, %s28, 1
      %s458 = scalar_lea.vmem %s6, %s457
      %p459 = pneg %p192
      %p460 = pneg %p189
      %p461 = scmp.lt.s32.totalorder %s28, 1
      %s462 = scalar_select %p461, %s28, 1
      %s463 = smul.addr %s462, 4
      %s464 = smul.addr %s463, 4
      %s465 = scalar_lea.vmem %s7, %s464
      %p466 = pneg %p218
      %p467 = pneg %p215
      %p468 = scmp.lt.s32.totalorder %s28, 1
      %s469 = scalar_select %p468, %s28, 1
      %s470 = smul.addr %s469, 4
      %s471 = smul.addr %s470, 4
      %s472 = scalar_lea.vmem %s8, %s471
      %p473 = pneg %p244
      %p474 = pneg %p241
      %p475 = scmp.lt.s32.totalorder %s28, 1
      %s476 = scalar_select %p475, %s28, 1
      %s477 = scalar_lea.vmem %s9, %s476
      %p478 = pneg %p270
      %p479 = pneg %p267
      %p480 = scmp.lt.s32.totalorder %s28, 1
      %s481 = scalar_select %p480, %s28, 1
      %s482 = smul.addr %s481, 16
      %s483 = smul.addr %s482, 4
      %s484 = scalar_lea.vmem %s10, %s483
      %p485 = pneg %p296
      %p486 = pneg %p293
      %p487 = pneg %p317
      %p488 = pneg %p314
      %p489 = pneg %p343
      %p490 = pneg %p340
      %p491 = scmp.lt.s32.totalorder %s27, 1
      %s492 = scalar_select %p491, %s27, 1
      %s493 = smul.addr %s492, 8
      %s494 = scalar_lea.vmem %s12, %s493
      %p495 = scmp.lt.s32.totalorder %s28, 1
      %s496 = scalar_select %p495, %s28, 1
      %s497 = smul.addr %s496, 8
      %s498 = scalar_lea.vmem %s4, %s497
      %p499 = scmp.lt.s32.totalorder %s28, 1
      %s500 = scalar_select %p499, %s28, 1
      %s501 = smul.addr %s500, 4
      %s502 = smul.addr %s501, 4
      %s503 = scalar_lea.vmem %s5, %s502
      %p504 = scmp.lt.s32.totalorder %s28, 1
      %s505 = scalar_select %p504, %s28, 1
      %s506 = scalar_lea.vmem %s6, %s505
      %p507 = scmp.lt.s32.totalorder %s28, 1
      %s508 = scalar_select %p507, %s28, 1
      %s509 = smul.addr %s508, 4
      %s510 = smul.addr %s509, 4
      %s511 = scalar_lea.vmem %s7, %s510
      %p512 = scmp.lt.s32.totalorder %s28, 1
      %s513 = scalar_select %p512, %s28, 1
      %s514 = smul.addr %s513, 4
      %s515 = smul.addr %s514, 4
      %s516 = scalar_lea.vmem %s8, %s515
      %p517 = scmp.lt.s32.totalorder %s28, 1
      %s518 = scalar_select %p517, %s28, 1
      %s519 = scalar_lea.vmem %s9, %s518
      %p520 = scmp.lt.s32.totalorder %s28, 1
      %s521 = scalar_select %p520, %s28, 1
      %s522 = smul.addr %s521, 16
      %s523 = smul.addr %s522, 4
      %s524 = scalar_lea.vmem %s10, %s523
      %p525 = scmp.lt.s32.totalorder %s27, 1
      %s526 = scalar_select %p525, %s27, 1
      %s527 = smul.addr %s526, 8
      %s528 = scalar_lea.vmem %s12, %s527
      %p530 = scmp.eq.s32.totalorder %s28, 0
      // Predicated region
      $region69: #{gpt_forward.1} parent=67 // pred_check
        %p531 = pneg %p530
      $region70: #{gpt_forward.1} parent=67 // pred_check_branch
        %533 = sbr.rel (%p531) target = $region72
      $region71: #{gpt_forward.1} parent=67 // pred_region
        %s534 = smul.u32 %s27, 8
        %s535 = scalar_lea.vmem %s0, %s534
        %v536 = vld [vmem:[%s535] sm:$0xff]
        %v537 = vlaneseq
        %v538 = vand.u32 %v537, 127
        %539 = vset.pattern.permute.xlu0 0
        %540 = vperm.xlu0 %539, %v536
        %v541 = vpop.permute.xlu0 %540
        %vm542 = vcmp.eq.s32.totalorder %v538, %v541
        %v543 = vsel %vm542, 1, 0
        %v544 = vcvt.s32.f32 %v543
        %v545 = vpack.c.bf16 %v544, %v544
        %v546 = vld [vmem:[%s1] sm:$0xf]
        %v547 = vld [vmem:[%s1 + $0x4] sm:$0xf]
        %v548 = vld [vmem:[%s1 + $0x8] sm:$0xf]
        %v549 = vld [vmem:[%s1 + $0xc] sm:$0xf]
        %v550 = vld [vmem:[%s1 + $0x10] sm:$0xf]
        %v551 = vld [vmem:[%s1 + $0x14] sm:$0xf]
        %v552 = vld [vmem:[%s1 + $0x18] sm:$0xf]
        %v553 = vld [vmem:[%s1 + $0x1c] sm:$0xf]
        %v554 = vld [vmem:[%s2] sm:$0xff]
        %v563 = vunpack.c.l.b16 %v546
        %v564 = vunpack.c.l.b16 %v547
        %v565 = vunpack.c.l.b16 %v548
        %v566 = vunpack.c.l.b16 %v549
        %v567 = vunpack.c.l.b16 %v550
        %v568 = vunpack.c.l.b16 %v551
        %v569 = vunpack.c.l.b16 %v552
        %v570 = vunpack.c.l.b16 %v553
        %v571 = vpack.c.b16 %v564, %v563
        %v572 = vpack.c.b16 %v566, %v565
        %v573 = vpack.c.b16 %v568, %v567
        %v574 = vpack.c.b16 %v570, %v569
        %vm579 = vcmask 523264
        %v581 = vsel %vm579, %v545, 0
        %583 = vmatprep.subr.bf16.mxu0 0
        %584 = vmatpush1.bf16.msra.mxu0 0
        %585 = vmatprep.subr.bf16.mxu0 0
        %586 = vmatpush1.bf16.msra.mxu0 0
        %587 = vmatprep.subr.bf16.mxu0 0
        %588 = vmatpush1.bf16.msra.mxu0 0
        %589 = vmatprep.subr.bf16.mxu0 0
        %590 = vmatpush1.bf16.msra.mxu0 0
        %591 = vmatprep.subr.bf16.mxu0 0
        %592 = vmatpush1.bf16.msra.mxu0 %v574
        %593 = vmatprep.subr.bf16.mxu0 0
        %594 = vmatpush1.bf16.msra.mxu0 %v573
        %595 = vmatprep.subr.bf16.mxu0 0
        %596 = vmatpush1.bf16.msra.mxu0 %v572
        %597 = vmatprep.subr.bf16.mxu0 0
        %598 = vmatpush1.bf16.msra.mxu0 %v571
        %599 = vmatprep.subr.bf16.mxu0 0
        %600 = vmatpush2.bf16.msra.mxu0 0
        %601 = vmatprep.subr.bf16.mxu0 0
        %602 = vmatpush2.bf16.msra.mxu0 0
        %603 = vmatprep.subr.bf16.mxu0 0
        %604 = vmatpush2.bf16.msra.mxu0 0
        %605 = vmatprep.subr.bf16.mxu0 0
        %606 = vmatpush2.bf16.msra.mxu0 0
        %607 = vmatprep.subr.bf16.mxu0 0
        %608 = vmatpush2.bf16.msra.mxu0 0
        %609 = vmatprep.subr.bf16.mxu0 0
        %610 = vmatpush2.bf16.msra.mxu0 0
        %611 = vmatprep.subr.bf16.mxu0 0
        %612 = vmatpush2.bf16.msra.mxu0 0
        %613 = vmatprep.subr.bf16.mxu0 0
        %614 = vmatpush2.bf16.msra.mxu0 0
        %615 = vmatprep.mubr.bf16.mxu0 0
        %616 = vmatmul.mubr.bf16.gmra.mxu0 %v581
        %v617 = vpop.f32.mrf.mxu0
        %v618 = vadd.f32 %v554, %v617
        %v619 = vpop.f32.mrf.mxu0
        %v620 = vpop.f32.mrf.mxu0
        %v621 = vpop.f32.mrf.mxu0
        %622 = vdwg.mxu0
        %vm623 = vcmask 261120
        %624 = vst.msk [vmem:[#allocation2] sm:$0xff] %vm623, %v618
      $region72: #{gpt_forward.1} parent=67 // pred_fallthru
        _
      %v625 = vld [vmem:[#allocation2] sm:$0xff]
      %v626 = vld [vmem:[%s498] sm:$0x3f]
      %vm627 = vcmask 261120
      %v628 = vsel %vm627, %v625, 0.0
      %629 = vadd.xlane.f32.xlu0 %v628
      %v630 = vpop.xlane.xlu0 %629
      %v631 = vrcp.pop 32.0
      %v632 = vmul.f32 %v630, %v631
      %v633 = vsub.f32 %v625, %v632
      %v634 = vmul.f32 %v633, %v633
      %v635 = vsel %vm627, %v634, 0.0
      %636 = vadd.xlane.f32.xlu0 %v635
      %v637 = vpop.xlane.xlu0 %636
      %v638 = vmul.f32 %v637, %v631
      %v639 = vadd.f32 %v638, 1e-05
      %v640 = vrsqrt.pop %v639
      %v641 = vmul.f32 %v633, %v640
      %v642 = vlaneseq
      %v643 = vshrl.u32 %v642, 7
      %v644 = vsub.s32 0, %v643
      %v645 = vrot.slane %v626, %v644
      %v646 = vmul.f32 %v641, %v645
      %v647 = vlaneseq
      %v648 = vshrl.u32 %v647, 7
      %v649 = vsub.s32 1, %v648
      %v650 = vrot.slane %v626, %v649
      %v651 = vadd.f32 %v646, %v650
      %v652 = vpack.c.bf16 %v651, %v651
      %v653 = vld [vmem:[%s503] sm:$0xf]
      %v654 = vld [vmem:[%s503 + $0x4] sm:$0xf]
      %v655 = vld [vmem:[%s503 + $0x8] sm:$0xf]
      %v656 = vld [vmem:[%s503 + $0xc] sm:$0xf]
      %v657 = vld [vmem:[%s506] sm:$0x1]
      %v659 = vlaneseq
      %v660 = vshrl.u32 %v659, 7
      %v661 = vsub.s32 0, %v660
      %v662 = vrot.slane %v657, %v661
      %v668 = vunpack.c.l.b16 %v653
      %v669 = vunpack.c.l.b16 %v654
      %v670 = vunpack.c.l.b16 %v655
      %v671 = vunpack.c.l.b16 %v656
      %v672 = vpack.c.b16 %v669, %v668
      %v673 = vpack.c.b16 %v671, %v670
      %v677 = vsel %vm627, %v652, 0
      %679 = vmatprep.subr.bf16.mxu0 0
      %680 = vmatpush1.bf16.msra.mxu0 0
      %681 = vmatprep.subr.bf16.mxu0 0
      %682 = vmatpush1.bf16.msra.mxu0 0
      %683 = vmatprep.subr.bf16.mxu0 0
      %684 = vmatpush1.bf16.msra.mxu0 0
      %685 = vmatprep.subr.bf16.mxu0 0
      %686 = vmatpush1.bf16.msra.mxu0 0
      %687 = vmatprep.subr.bf16.mxu0 0
      %688 = vmatpush1.bf16.msra.mxu0 0
      %689 = vmatprep.subr.bf16.mxu0 0
      %690 = vmatpush1.bf16.msra.mxu0 0
      %691 = vmatprep.subr.bf16.mxu0 0
      %692 = vmatpush1.bf16.msra.mxu0 %v673
      %693 = vmatprep.subr.bf16.mxu0 0
      %694 = vmatpush1.bf16.msra.mxu0 %v672
      %695 = vmatprep.subr.bf16.mxu0 0
      %696 = vmatpush2.bf16.msra.mxu0 0
      %697 = vmatprep.subr.bf16.mxu0 0
      %698 = vmatpush2.bf16.msra.mxu0 0
      %699 = vmatprep.subr.bf16.mxu0 0
      %700 = vmatpush2.bf16.msra.mxu0 0
      %701 = vmatprep.subr.bf16.mxu0 0
      %702 = vmatpush2.bf16.msra.mxu0 0
      %703 = vmatprep.subr.bf16.mxu0 0
      %704 = vmatpush2.bf16.msra.mxu0 0
      %705 = vmatprep.subr.bf16.mxu0 0
      %706 = vmatpush2.bf16.msra.mxu0 0
      %707 = vmatprep.subr.bf16.mxu0 0
      %708 = vmatpush2.bf16.msra.mxu0 0
      %709 = vmatprep.subr.bf16.mxu0 0
      %710 = vmatpush2.bf16.msra.mxu0 0
      %711 = vmatprep.mubr.bf16.mxu0 0
      %712 = vmatmul.mubr.bf16.gmra.mxu0 %v677
      %v713 = vpop.f32.mrf.mxu0
      %v714 = vadd.f32 %v662, %v713
      %v715 = vpop.f32.mrf.mxu0
      %v716 = vpop.f32.mrf.mxu0
      %v717 = vpop.f32.mrf.mxu0
      %718 = vdwg.mxu0
      %v719 = vpack.c.bf16 %v714, %v714
      %v720 = vlaneseq
      %v721 = vshrl.u32 %v720, 7
      %v722 = vlaneseq
      %v723 = vand.u32 %v722, 127
      %vm724 = vcmp.ge.s32.totalorder %v721, %v723
      %726 = vrot.lane.b32.xlu0 %v719, 96
      %v727 = vpop.permute.xlu0 %726
      %vm728 = vcmask 130048
      %v730 = vsel %vm728, %v719, 0
      %v733 = vsel %vm728, %v727, 0
      %735 = vmatprep.subr.bf16.mxu0 0
      %736 = vmatpush1.bf16.xpose.msra.mxu0 0
      %737 = vmatprep.subr.bf16.mxu0 0
      %738 = vmatpush1.bf16.xpose.msra.mxu0 0
      %739 = vmatprep.subr.bf16.mxu0 0
      %740 = vmatpush1.bf16.xpose.msra.mxu0 0
      %741 = vmatprep.subr.bf16.mxu0 0
      %742 = vmatpush1.bf16.xpose.msra.mxu0 0
      %743 = vmatprep.subr.bf16.mxu0 0
      %744 = vmatpush1.bf16.xpose.msra.mxu0 0
      %745 = vmatprep.subr.bf16.mxu0 0
      %746 = vmatpush1.bf16.xpose.msra.mxu0 0
      %747 = vmatprep.subr.bf16.mxu0 0
      %748 = vmatpush1.bf16.xpose.msra.mxu0 0
      %749 = vmatprep.subr.bf16.mxu0 0
      %750 = vmatpush1.bf16.xpose.msra.mxu0 %v733
      %751 = vmatprep.subr.bf16.mxu0 0
      %752 = vmatpush2.bf16.xpose.msra.mxu0 0
      %753 = vmatprep.subr.bf16.mxu0 0
      %754 = vmatpush2.bf16.xpose.msra.mxu0 0
      %755 = vmatprep.subr.bf16.mxu0 0
      %756 = vmatpush2.bf16.xpose.msra.mxu0 0
      %757 = vmatprep.subr.bf16.mxu0 0
      %758 = vmatpush2.bf16.xpose.msra.mxu0 0
      %759 = vmatprep.subr.bf16.mxu0 0
      %760 = vmatpush2.bf16.xpose.msra.mxu0 0
      %761 = vmatprep.subr.bf16.mxu0 0
      %762 = vmatpush2.bf16.xpose.msra.mxu0 0
      %763 = vmatprep.subr.bf16.mxu0 0
      %764 = vmatpush2.bf16.xpose.msra.mxu0 0
      %765 = vmatprep.subr.bf16.mxu0 0
      %766 = vmatpush2.bf16.xpose.msra.mxu0 0
      %767 = vmatprep.mubr.bf16.mxu0 0
      %768 = vmatmul.mubr.bf16.gmra.mxu0 %v730
      %v769 = vpop.f32.mrf.mxu0
      %v770 = vadd.f32 0.0, %v769
      %v771 = vpop.f32.mrf.mxu0
      %v772 = vpop.f32.mrf.mxu0
      %v773 = vpop.f32.mrf.mxu0
      %774 = vdwg.mxu0
      %v775 = vsel %vm724, %v770, -1e+30
      %vm776 = vcmask 64512
      %v777 = vsel %vm776, %v775, -inf
      %778 = vmax.xlane.f32.xlu0 %v777
      %v779 = vpop.xlane.xlu0 %778
      %v780 = vsub.f32 %v775, %v779
      %v781 = vmul.f32 %v780, 1.442695
      %v782 = vpow.pop %v781
      %v783 = vsel %vm776, %v782, 0.0
      %784 = vadd.xlane.f32.xlu0 %v783
      %v785 = vpop.xlane.xlu0 %784
      %v786 = vrcp.pop %v785
      %v787 = vmul.f32 %v782, %v786
      %v788 = vpack.c.bf16 %v787, %v787
      %789 = vrot.lane.b32.xlu0 %v719, 64
      %v790 = vpop.permute.xlu0 %789
      %v792 = vsel %vm776, %v788, 0
      %vm794 = vcmask 1043456
      %v796 = vsel %vm794, %v790, 0
      %798 = vmatprep.subr.bf16.mxu0 0
      %799 = vmatpush1.bf16.msra.mxu0 0
      %800 = vmatprep.subr.bf16.mxu0 0
      %801 = vmatpush1.bf16.msra.mxu0 0
      %802 = vmatprep.subr.bf16.mxu0 0
      %803 = vmatpush1.bf16.msra.mxu0 0
      %804 = vmatprep.subr.bf16.mxu0 0
      %805 = vmatpush1.bf16.msra.mxu0 0
      %806 = vmatprep.subr.bf16.mxu0 0
      %807 = vmatpush1.bf16.msra.mxu0 0
      %808 = vmatprep.subr.bf16.mxu0 0
      %809 = vmatpush1.bf16.msra.mxu0 0
      %810 = vmatprep.subr.bf16.mxu0 0
      %811 = vmatpush1.bf16.msra.mxu0 0
      %812 = vmatprep.subr.bf16.mxu0 0
      %813 = vmatpush1.bf16.msra.mxu0 %v796
      %814 = vmatprep.subr.bf16.mxu0 0
      %815 = vmatpush2.bf16.msra.mxu0 0
      %816 = vmatprep.subr.bf16.mxu0 0
      %817 = vmatpush2.bf16.msra.mxu0 0
      %818 = vmatprep.subr.bf16.mxu0 0
      %819 = vmatpush2.bf16.msra.mxu0 0
      %820 = vmatprep.subr.bf16.mxu0 0
      %821 = vmatpush2.bf16.msra.mxu0 0
      %822 = vmatprep.subr.bf16.mxu0 0
      %823 = vmatpush2.bf16.msra.mxu0 0
      %824 = vmatprep.subr.bf16.mxu0 0
      %825 = vmatpush2.bf16.msra.mxu0 0
      %826 = vmatprep.subr.bf16.mxu0 0
      %827 = vmatpush2.bf16.msra.mxu0 0
      %828 = vmatprep.subr.bf16.mxu0 0
      %829 = vmatpush2.bf16.msra.mxu0 0
      %830 = vmatprep.mubr.bf16.mxu0 0
      %831 = vmatmul.mubr.bf16.gmra.mxu0 %v792
      %v832 = vpop.f32.mrf.mxu0
      %v833 = vadd.f32 0.0, %v832
      %v834 = vpop.f32.mrf.mxu0
      %v835 = vpop.f32.mrf.mxu0
      %v836 = vpop.f32.mrf.mxu0
      %837 = vdwg.mxu0
      %838 = vrot.lane.b32.xlu0 %v719, 112
      %v839 = vpop.permute.xlu0 %838
      %840 = vrot.lane.b32.xlu0 %v719, 80
      %v841 = vpop.permute.xlu0 %840
      %v843 = vsel %vm728, %v839, 0
      %v846 = vsel %vm728, %v841, 0
      %848 = vmatprep.subr.bf16.mxu0 0
      %849 = vmatpush1.bf16.xpose.msra.mxu0 0
      %850 = vmatprep.subr.bf16.mxu0 0
      %851 = vmatpush1.bf16.xpose.msra.mxu0 0
      %852 = vmatprep.subr.bf16.mxu0 0
      %853 = vmatpush1.bf16.xpose.msra.mxu0 0
      %854 = vmatprep.subr.bf16.mxu0 0
      %855 = vmatpush1.bf16.xpose.msra.mxu0 0
      %856 = vmatprep.subr.bf16.mxu0 0
      %857 = vmatpush1.bf16.xpose.msra.mxu0 0
      %858 = vmatprep.subr.bf16.mxu0 0
      %859 = vmatpush1.bf16.xpose.msra.mxu0 0
      %860 = vmatprep.subr.bf16.mxu0 0
      %861 = vmatpush1.bf16.xpose.msra.mxu0 0
      %862 = vmatprep.subr.bf16.mxu0 0
      %863 = vmatpush1.bf16.xpose.msra.mxu0 %v846
      %864 = vmatprep.subr.bf16.mxu0 0
      %865 = vmatpush2.bf16.xpose.msra.mxu0 0
      %866 = vmatprep.subr.bf16.mxu0 0
      %867 = vmatpush2.bf16.xpose.msra.mxu0 0
      %868 = vmatprep.subr.bf16.mxu0 0
      %869 = vmatpush2.bf16.xpose.msra.mxu0 0
      %870 = vmatprep.subr.bf16.mxu0 0
      %871 = vmatpush2.bf16.xpose.msra.mxu0 0
      %872 = vmatprep.subr.bf16.mxu0 0
      %873 = vmatpush2.bf16.xpose.msra.mxu0 0
      %874 = vmatprep.subr.bf16.mxu0 0
      %875 = vmatpush2.bf16.xpose.msra.mxu0 0
      %876 = vmatprep.subr.bf16.mxu0 0
      %877 = vmatpush2.bf16.xpose.msra.mxu0 0
      %878 = vmatprep.subr.bf16.mxu0 0
      %879 = vmatpush2.bf16.xpose.msra.mxu0 0
      %880 = vmatprep.mubr.bf16.mxu0 0
      %881 = vmatmul.mubr.bf16.gmra.mxu0 %v843
      %v882 = vpop.f32.mrf.mxu0
      %v883 = vadd.f32 0.0, %v882
      %v884 = vpop.f32.mrf.mxu0
      %v885 = vpop.f32.mrf.mxu0
      %v886 = vpop.f32.mrf.mxu0
      %887 = vdwg.mxu0
      %v888 = vsel %vm724, %v883, -1e+30
      %v889 = vsel %vm776, %v888, -inf
      %890 = vmax.xlane.f32.xlu0 %v889
      %v891 = vpop.xlane.xlu0 %890
      %v892 = vsub.f32 %v888, %v891
      %v893 = vmul.f32 %v892, 1.442695
      %v894 = vpow.pop %v893
      %v895 = vsel %vm776, %v894, 0.0
      %896 = vadd.xlane.f32.xlu0 %v895
      %v897 = vpop.xlane.xlu0 %896
      %v898 = vrcp.pop %v897
      %v899 = vmul.f32 %v894, %v898
      %v900 = vpack.c.bf16 %v899, %v899
      %901 = vrot.lane.b32.xlu0 %v719, 48
      %v902 = vpop.permute.xlu0 %901
      %v904 = vsel %vm776, %v900, 0
      %v907 = vsel %vm794, %v902, 0
      %909 = vmatprep.subr.bf16.mxu0 0
      %910 = vmatpush1.bf16.msra.mxu0 0
      %911 = vmatprep.subr.bf16.mxu0 0
      %912 = vmatpush1.bf16.msra.mxu0 0
      %913 = vmatprep.subr.bf16.mxu0 0
      %914 = vmatpush1.bf16.msra.mxu0 0
      %915 = vmatprep.subr.bf16.mxu0 0
      %916 = vmatpush1.bf16.msra.mxu0 0
      %917 = vmatprep.subr.bf16.mxu0 0
      %918 = vmatpush1.bf16.msra.mxu0 0
      %919 = vmatprep.subr.bf16.mxu0 0
      %920 = vmatpush1.bf16.msra.mxu0 0
      %921 = vmatprep.subr.bf16.mxu0 0
      %922 = vmatpush1.bf16.msra.mxu0 0
      %923 = vmatprep.subr.bf16.mxu0 0
      %924 = vmatpush1.bf16.msra.mxu0 %v907
      %925 = vmatprep.subr.bf16.mxu0 0
      %926 = vmatpush2.bf16.msra.mxu0 0
      %927 = vmatprep.subr.bf16.mxu0 0
      %928 = vmatpush2.bf16.msra.mxu0 0
      %929 = vmatprep.subr.bf16.mxu0 0
      %930 = vmatpush2.bf16.msra.mxu0 0
      %931 = vmatprep.subr.bf16.mxu0 0
      %932 = vmatpush2.bf16.msra.mxu0 0
      %933 = vmatprep.subr.bf16.mxu0 0
      %934 = vmatpush2.bf16.msra.mxu0 0
      %935 = vmatprep.subr.bf16.mxu0 0
      %936 = vmatpush2.bf16.msra.mxu0 0
      %937 = vmatprep.subr.bf16.mxu0 0
      %938 = vmatpush2.bf16.msra.mxu0 0
      %939 = vmatprep.subr.bf16.mxu0 0
      %940 = vmatpush2.bf16.msra.mxu0 0
      %941 = vmatprep.mubr.bf16.mxu0 0
      %942 = vmatmul.mubr.bf16.gmra.mxu0 %v904
      %v943 = vpop.f32.mrf.mxu0
      %v944 = vadd.f32 0.0, %v943
      %v945 = vpop.f32.mrf.mxu0
      %v946 = vpop.f32.mrf.mxu0
      %v947 = vpop.f32.mrf.mxu0
      %948 = vdwg.mxu0
      %950 = vrot.lane.b32.xlu0 %v944, 16
      %v951 = vpop.permute.xlu0 %950
      %v953 = vsel %vm728, %v833, %v951
      %v954 = vpack.c.bf16 %v953, %v953
      %v955 = vld [vmem:[%s511] sm:$0xf]
      %v956 = vld [vmem:[%s511 + $0x4] sm:$0xf]
      %v957 = vld [vmem:[%s511 + $0x8] sm:$0xf]
      %v958 = vld [vmem:[%s511 + $0xc] sm:$0xf]
      %v959 = vlaneseq
      %v960 = vshrl.u32 %v959, 7
      %v961 = vsub.s32 4, %v960
      %v962 = vrot.slane %v626, %v961
      %v967 = vunpack.c.l.b16 %v955
      %v968 = vunpack.c.l.b16 %v956
      %v969 = vunpack.c.l.b16 %v957
      %v970 = vunpack.c.l.b16 %v958
      %v971 = vpack.c.b16 %v968, %v967
      %v972 = vpack.c.b16 %v970, %v969
      %v976 = vsel %vm627, %v954, 0
      %978 = vmatprep.subr.bf16.mxu0 0
      %979 = vmatpush1.bf16.msra.mxu0 0
      %980 = vmatprep.subr.bf16.mxu0 0
      %981 = vmatpush1.bf16.msra.mxu0 0
      %982 = vmatprep.subr.bf16.mxu0 0
      %983 = vmatpush1.bf16.msra.mxu0 0
      %984 = vmatprep.subr.bf16.mxu0 0
      %985 = vmatpush1.bf16.msra.mxu0 0
      %986 = vmatprep.subr.bf16.mxu0 0
      %987 = vmatpush1.bf16.msra.mxu0 0
      %988 = vmatprep.subr.bf16.mxu0 0
      %989 = vmatpush1.bf16.msra.mxu0 0
      %990 = vmatprep.subr.bf16.mxu0 0
      %991 = vmatpush1.bf16.msra.mxu0 %v972
      %992 = vmatprep.subr.bf16.mxu0 0
      %993 = vmatpush1.bf16.msra.mxu0 %v971
      %994 = vmatprep.subr.bf16.mxu0 0
      %995 = vmatpush2.bf16.msra.mxu0 0
      %996 = vmatprep.subr.bf16.mxu0 0
      %997 = vmatpush2.bf16.msra.mxu0 0
      %998 = vmatprep.subr.bf16.mxu0 0
      %999 = vmatpush2.bf16.msra.mxu0 0
      %1000 = vmatprep.subr.bf16.mxu0 0
      %1001 = vmatpush2.bf16.msra.mxu0 0
      %1002 = vmatprep.subr.bf16.mxu0 0
      %1003 = vmatpush2.bf16.msra.mxu0 0
      %1004 = vmatprep.subr.bf16.mxu0 0
      %1005 = vmatpush2.bf16.msra.mxu0 0
      %1006 = vmatprep.subr.bf16.mxu0 0
      %1007 = vmatpush2.bf16.msra.mxu0 0
      %1008 = vmatprep.subr.bf16.mxu0 0
      %1009 = vmatpush2.bf16.msra.mxu0 0
      %1010 = vmatprep.mubr.bf16.mxu0 0
      %1011 = vmatmul.mubr.bf16.gmra.mxu0 %v976
      %v1012 = vpop.f32.mrf.mxu0
      %v1013 = vadd.f32 %v962, %v1012
      %v1014 = vpop.f32.mrf.mxu0
      %v1015 = vpop.f32.mrf.mxu0
      %v1016 = vpop.f32.mrf.mxu0
      %1017 = vdwg.mxu0
      %v1018 = vadd.f32 %v625, %v1013
      %v1019 = vsel %vm627, %v1018, 0.0
      %1020 = vadd.xlane.f32.xlu0 %v1019
      %v1021 = vpop.xlane.xlu0 %1020
      %v1022 = vmul.f32 %v1021, %v631
      %v1023 = vsub.f32 %v1018, %v1022
      %v1024 = vmul.f32 %v1023, %v1023
      %v1025 = vsel %vm627, %v1024, 0.0
      %1026 = vadd.xlane.f32.xlu0 %v1025
      %v1027 = vpop.xlane.xlu0 %1026
      %v1028 = vmul.f32 %v1027, %v631
      %v1029 = vadd.f32 %v1028, 1e-05
      %v1030 = vrsqrt.pop %v1029
      %v1031 = vmul.f32 %v1023, %v1030
      %v1032 = vlaneseq
      %v1033 = vshrl.u32 %v1032, 7
      %v1034 = vsub.s32 2, %v1033
      %v1035 = vrot.slane %v626, %v1034
      %v1036 = vmul.f32 %v1031, %v1035
      %v1037 = vlaneseq
      %v1038 = vshrl.u32 %v1037, 7
      %v1039 = vsub.s32 3, %v1038
      %v1040 = vrot.slane %v626, %v1039
      %v1041 = vadd.f32 %v1036, %v1040
      %v1042 = vpack.c.bf16 %v1041, %v1041
      %v1043 = vld [vmem:[%s516] sm:$0xf]
      %v1044 = vld [vmem:[%s516 + $0x4] sm:$0xf]
      %v1045 = vld [vmem:[%s516 + $0x8] sm:$0xf]
      %v1046 = vld [vmem:[%s516 + $0xc] sm:$0xf]
      %v1047 = vld [vmem:[%s519] sm:$0x1]
      %v1049 = vlaneseq
      %v1050 = vshrl.u32 %v1049, 7
      %v1051 = vsub.s32 0, %v1050
      %v1052 = vrot.slane %v1047, %v1051
      %v1058 = vunpack.c.l.b16 %v1043
      %v1059 = vunpack.c.l.b16 %v1044
      %v1060 = vunpack.c.l.b16 %v1045
      %v1061 = vunpack.c.l.b16 %v1046
      %v1062 = vpack.c.b16 %v1059, %v1058
      %v1063 = vpack.c.b16 %v1061, %v1060
      %v1067 = vsel %vm627, %v1042, 0
      %1069 = vmatprep.subr.bf16.mxu0 0
      %1070 = vmatpush1.bf16.msra.mxu0 0
      %1071 = vmatprep.subr.bf16.mxu0 0
      %1072 = vmatpush1.bf16.msra.mxu0 0
      %1073 = vmatprep.subr.bf16.mxu0 0
      %1074 = vmatpush1.bf16.msra.mxu0 0
      %1075 = vmatprep.subr.bf16.mxu0 0
      %1076 = vmatpush1.bf16.msra.mxu0 0
      %1077 = vmatprep.subr.bf16.mxu0 0
      %1078 = vmatpush1.bf16.msra.mxu0 0
      %1079 = vmatprep.subr.bf16.mxu0 0
      %1080 = vmatpush1.bf16.msra.mxu0 0
      %1081 = vmatprep.subr.bf16.mxu0 0
      %1082 = vmatpush1.bf16.msra.mxu0 %v1063
      %1083 = vmatprep.subr.bf16.mxu0 0
      %1084 = vmatpush1.bf16.msra.mxu0 %v1062
      %1085 = vmatprep.subr.bf16.mxu0 0
      %1086 = vmatpush2.bf16.msra.mxu0 0
      %1087 = vmatprep.subr.bf16.mxu0 0
      %1088 = vmatpush2.bf16.msra.mxu0 0
      %1089 = vmatprep.subr.bf16.mxu0 0
      %1090 = vmatpush2.bf16.msra.mxu0 0
      %1091 = vmatprep.subr.bf16.mxu0 0
      %1092 = vmatpush2.bf16.msra.mxu0 0
      %1093 = vmatprep.subr.bf16.mxu0 0
      %1094 = vmatpush2.bf16.msra.mxu0 0
      %1095 = vmatprep.subr.bf16.mxu0 0
      %1096 = vmatpush2.bf16.msra.mxu0 0
      %1097 = vmatprep.subr.bf16.mxu0 0
      %1098 = vmatpush2.bf16.msra.mxu0 0
      %1099 = vmatprep.subr.bf16.mxu0 0
      %1100 = vmatpush2.bf16.msra.mxu0 0
      %1101 = vmatprep.mubr.bf16.mxu0 0
      %1102 = vmatmul.mubr.bf16.gmra.mxu0 %v1067
      %v1103 = vpop.f32.mrf.mxu0
      %v1104 = vadd.f32 %v1052, %v1103
      %v1105 = vpop.f32.mrf.mxu0
      %v1106 = vpop.f32.mrf.mxu0
      %v1107 = vpop.f32.mrf.mxu0
      %1108 = vdwg.mxu0
      %v1109 = vmul.f32 %v1104, 0.5
      %v1110 = vmul.f32 %v1104, 0.044715
      %v1111 = vmul.f32 %v1110, %v1104
      %v1112 = vmul.f32 %v1111, %v1104
      %v1113 = vadd.f32 %v1104, %v1112
      %v1114 = vmul.f32 %v1113, 0.7978846
      %v1115 = vtanh.pop %v1114
      %v1116 = vadd.f32 %v1115, 1.0
      %v1117 = vmul.f32 %v1109, %v1116
      %v1118 = vpack.c.bf16 %v1117, %v1117
      %v1119 = vld [vmem:[%s524] sm:$0xf]
      %v1120 = vld [vmem:[%s524 + $0x4] sm:$0xf]
      %v1121 = vld [vmem:[%s524 + $0x8] sm:$0xf]
      %v1122 = vld [vmem:[%s524 + $0xc] sm:$0xf]
      %v1123 = vld [vmem:[%s524 + $0x10] sm:$0xf]
      %v1124 = vld [vmem:[%s524 + $0x14] sm:$0xf]
      %v1125 = vld [vmem:[%s524 + $0x18] sm:$0xf]
      %v1126 = vld [vmem:[%s524 + $0x1c] sm:$0xf]
      %v1127 = vld [vmem:[%s524 + $0x20] sm:$0xf]
      %v1128 = vld [vmem:[%s524 + $0x24] sm:$0xf]
      %v1129 = vld [vmem:[%s524 + $0x28] sm:$0xf]
      %v1130 = vld [vmem:[%s524 + $0x2c] sm:$0xf]
      %v1131 = vld [vmem:[%s524 + $0x30] sm:$0xf]
      %v1132 = vld [vmem:[%s524 + $0x34] sm:$0xf]
      %v1133 = vld [vmem:[%s524 + $0x38] sm:$0xf]
      %v1134 = vld [vmem:[%s524 + $0x3c] sm:$0xf]
      %v1135 = vlaneseq
      %v1136 = vshrl.u32 %v1135, 7
      %v1137 = vsub.s32 5, %v1136
      %v1138 = vrot.slane %v626, %v1137
      %v1155 = vunpack.c.l.b16 %v1119
      %v1156 = vunpack.c.l.b16 %v1120
      %v1157 = vunpack.c.l.b16 %v1121
      %v1158 = vunpack.c.l.b16 %v1122
      %v1159 = vunpack.c.l.b16 %v1123
      %v1160 = vunpack.c.l.b16 %v1124
      %v1161 = vunpack.c.l.b16 %v1125
      %v1162 = vunpack.c.l.b16 %v1126
      %v1163 = vunpack.c.l.b16 %v1127
      %v1164 = vunpack.c.l.b16 %v1128
      %v1165 = vunpack.c.l.b16 %v1129
      %v1166 = vunpack.c.l.b16 %v1130
      %v1167 = vunpack.c.l.b16 %v1131
      %v1168 = vunpack.c.l.b16 %v1132
      %v1169 = vunpack.c.l.b16 %v1133
      %v1170 = vunpack.c.l.b16 %v1134
      %v1171 = vpack.c.b16 %v1156, %v1155
      %v1172 = vpack.c.b16 %v1158, %v1157
      %v1173 = vpack.c.b16 %v1160, %v1159
      %v1174 = vpack.c.b16 %v1162, %v1161
      %v1175 = vpack.c.b16 %v1164, %v1163
      %v1176 = vpack.c.b16 %v1166, %v1165
      %v1177 = vpack.c.b16 %v1168, %v1167
      %v1178 = vpack.c.b16 %v1170, %v1169
      %1187 = vmatprep.subr.bf16.mxu0 0
      %1188 = vmatpush1.bf16.msra.mxu0 %v1178
      %1189 = vmatprep.subr.bf16.mxu0 0
      %1190 = vmatpush1.bf16.msra.mxu0 %v1177
      %1191 = vmatprep.subr.bf16.mxu0 0
      %1192 = vmatpush1.bf16.msra.mxu0 %v1176
      %1193 = vmatprep.subr.bf16.mxu0 0
      %1194 = vmatpush1.bf16.msra.mxu0 %v1175
      %1195 = vmatprep.subr.bf16.mxu0 0
      %1196 = vmatpush1.bf16.msra.mxu0 %v1174
      %1197 = vmatprep.subr.bf16.mxu0 0
      %1198 = vmatpush1.bf16.msra.mxu0 %v1173
      %1199 = vmatprep.subr.bf16.mxu0 0
      %1200 = vmatpush1.bf16.msra.mxu0 %v1172
      %1201 = vmatprep.subr.bf16.mxu0 0
      %1202 = vmatpush1.bf16.msra.mxu0 %v1171
      %1203 = vmatprep.subr.bf16.mxu0 0
      %1204 = vmatpush2.bf16.msra.mxu0 0
      %1205 = vmatprep.subr.bf16.mxu0 0
      %1206 = vmatpush2.bf16.msra.mxu0 0
      %1207 = vmatprep.subr.bf16.mxu0 0
      %1208 = vmatpush2.bf16.msra.mxu0 0
      %1209 = vmatprep.subr.bf16.mxu0 0
      %1210 = vmatpush2.bf16.msra.mxu0 0
      %1211 = vmatprep.subr.bf16.mxu0 0
      %1212 = vmatpush2.bf16.msra.mxu0 0
      %1213 = vmatprep.subr.bf16.mxu0 0
      %1214 = vmatpush2.bf16.msra.mxu0 0
      %1215 = vmatprep.subr.bf16.mxu0 0
      %1216 = vmatpush2.bf16.msra.mxu0 0
      %1217 = vmatprep.subr.bf16.mxu0 0
      %1218 = vmatpush2.bf16.msra.mxu0 0
      %1219 = vmatprep.mubr.bf16.mxu0 0
      %1220 = vmatmul.mubr.bf16.gmra.mxu0 %v1118
      %v1221 = vpop.f32.mrf.mxu0
      %v1222 = vadd.f32 %v1138, %v1221
      %v1223 = vpop.f32.mrf.mxu0
      %v1224 = vpop.f32.mrf.mxu0
      %v1225 = vpop.f32.mrf.mxu0
      %1226 = vdwg.mxu0
      %v1227 = vadd.f32 %v1018, %v1222
      %1228 = vst.msk [vmem:[#allocation2] sm:$0xff] %vm627, %v1227
      %p1229 = scmp.eq.s32.totalorder %s28, 1
      // Predicated region
      $region73: #{gpt_forward.1} parent=67 // pred_check
        %p1230 = pneg %p1229
      $region74: #{gpt_forward.1} parent=67 // pred_check_branch
        %1232 = sbr.rel (%p1230) target = $region76
      $region75: #{gpt_forward.1} parent=67 // pred_region
        %v1233 = vld [vmem:[%s11] sm:$0x1]
        %v1234 = vld [vmem:[%s11 + $0x1] sm:$0x1]
        %v1235 = vsel %vm627, %v1227, 0.0
        %1236 = vadd.xlane.f32.xlu0 %v1235
        %v1237 = vpop.xlane.xlu0 %1236
        %v1238 = vmul.f32 %v1237, %v631
        %v1239 = vsub.f32 %v1227, %v1238
        %v1240 = vmul.f32 %v1239, %v1239
        %v1241 = vsel %vm627, %v1240, 0.0
        %1242 = vadd.xlane.f32.xlu0 %v1241
        %v1243 = vpop.xlane.xlu0 %1242
        %v1244 = vmul.f32 %v1243, %v631
        %v1245 = vadd.f32 %v1244, 1e-05
        %v1246 = vrsqrt.pop %v1245
        %v1247 = vmul.f32 %v1239, %v1246
        %v1248 = vlaneseq
        %v1249 = vshrl.u32 %v1248, 7
        %v1250 = vsub.s32 0, %v1249
        %v1251 = vrot.slane %v1233, %v1250
        %v1252 = vmul.f32 %v1247, %v1251
        %v1253 = vlaneseq
        %v1254 = vshrl.u32 %v1253, 7
        %v1255 = vsub.s32 0, %v1254
        %v1256 = vrot.slane %v1234, %v1255
        %v1257 = vadd.f32 %v1252, %v1256
        %v1258 = vpack.c.bf16 %v1257, %v1257
        %v1259 = vld [vmem:[%s3] sm:$0xf]
        %v1260 = vld [vmem:[%s3 + $0x4] sm:$0xf]
        %v1261 = vld [vmem:[%s3 + $0x8] sm:$0xf]
        %v1262 = vld [vmem:[%s3 + $0xc] sm:$0xf]
        %v1267 = vunpack.c.l.b16 %v1259
        %v1268 = vunpack.c.l.b16 %v1260
        %v1269 = vunpack.c.l.b16 %v1261
        %v1270 = vunpack.c.l.b16 %v1262
        %v1271 = vpack.c.b16 %v1268, %v1267
        %v1272 = vpack.c.b16 %v1270, %v1269
        %v1276 = vsel %vm627, %v1258, 0
        %1278 = vmatprep.subr.bf16.mxu0 0
        %1279 = vmatpush1.bf16.msra.mxu0 0
        %1280 = vmatprep.subr.bf16.mxu0 0
        %1281 = vmatpush1.bf16.msra.mxu0 0
        %1282 = vmatprep.subr.bf16.mxu0 0
        %1283 = vmatpush1.bf16.msra.mxu0 0
        %1284 = vmatprep.subr.bf16.mxu0 0
        %1285 = vmatpush1.bf16.msra.mxu0 0
        %1286 = vmatprep.subr.bf16.mxu0 0
        %1287 = vmatpush1.bf16.msra.mxu0 0
        %1288 = vmatprep.subr.bf16.mxu0 0
        %1289 = vmatpush1.bf16.msra.mxu0 0
        %1290 = vmatprep.subr.bf16.mxu0 0
        %1291 = vmatpush1.bf16.msra.mxu0 %v1272
        %1292 = vmatprep.subr.bf16.mxu0 0
        %1293 = vmatpush1.bf16.msra.mxu0 %v1271
        %1294 = vmatprep.subr.bf16.mxu0 0
        %1295 = vmatpush2.bf16.msra.mxu0 0
        %1296 = vmatprep.subr.bf16.mxu0 0
        %1297 = vmatpush2.bf16.msra.mxu0 0
        %1298 = vmatprep.subr.bf16.mxu0 0
        %1299 = vmatpush2.bf16.msra.mxu0 0
        %1300 = vmatprep.subr.bf16.mxu0 0
        %1301 = vmatpush2.bf16.msra.mxu0 0
        %1302 = vmatprep.subr.bf16.mxu0 0
        %1303 = vmatpush2.bf16.msra.mxu0 0
        %1304 = vmatprep.subr.bf16.mxu0 0
        %1305 = vmatpush2.bf16.msra.mxu0 0
        %1306 = vmatprep.subr.bf16.mxu0 0
        %1307 = vmatpush2.bf16.msra.mxu0 0
        %1308 = vmatprep.subr.bf16.mxu0 0
        %1309 = vmatpush2.bf16.msra.mxu0 0
        %1310 = vmatprep.mubr.bf16.mxu0 0
        %1311 = vmatmul.mubr.bf16.gmra.mxu0 %v1276
        %v1312 = vpop.f32.mrf.mxu0
        %v1313 = vadd.f32 0.0, %v1312
        %v1314 = vpop.f32.mrf.mxu0
        %v1315 = vpop.f32.mrf.mxu0
        %v1316 = vpop.f32.mrf.mxu0
        %1317 = vdwg.mxu0
        %1318 = vst [vmem:[%s528] sm:$0xff] %v1313
      $region76: #{gpt_forward.1} parent=67 // pred_fallthru
        _
      %p1319 = scmp.lt.s32.totalorder %s27, 1
      %s1320 = scalar_select %p1319, %s27, 1
      %s1321 = smul.addr %s1320, 8
      %s1322 = scalar_lea.vmem %s12, %s1321
      // Predicated region
      $region77: #{gpt_forward.1} parent=67 // pred_check
        %p1323 = pneg %p340
      $region78: #{gpt_forward.1} parent=67 // pred_check_branch
        %1325 = sbr.rel (%p1323) target = $region80
      $region79: #{gpt_forward.1} parent=67 // pred_region
        _
      $region80: #{gpt_forward.1} parent=67 // pred_fallthru
        _
    $region68: #{gpt_forward.1} parent=5 // pred_fallthru
      _
    %p1326 = scmp.le.s32.totalorder 2, %s18
    // Predicated region
    $region81: #{gpt_forward.1} parent=5 // pred_check
      %p1327 = pneg %p1326
    $region82: #{gpt_forward.1} parent=5 // pred_check_branch
      %1329 = sbr.rel (%p1327) target = $region84
    $region83: #{gpt_forward.1} parent=5 // pred_region
      %s1330 = ssub.s32 %s18, 2
      // Predicated region
      $region85: #{gpt_forward.1} parent=83 // pred_check
        %p1331 = pneg %p346
      $region86: #{gpt_forward.1} parent=83 // pred_check_branch
        %1333 = sbr.rel (%p1331) target = $region88
      $region87: #{gpt_forward.1} parent=83 // pred_region
        %p1334 = scmp.lt.s32.totalorder %s29, 1
        %s1335 = scalar_select %p1334, %s29, 1
        %s1336 = smul.addr %s1335, 8
        %s1337 = scalar_lea.vmem %s12, %s1336
      $region88: #{gpt_forward.1} parent=83 // pred_fallthru
        _
    $region84: #{gpt_forward.1} parent=5 // pred_fallthru
      _
  $region6: #{gpt_forward.1} parent=0 // loop_footer
    %s22 = sadd.s32 1, %s18
  $region7: #{gpt_forward.1} parent=0 // loop_footer_branch
    %17 = sbr.rel target = $region3
  $region8: #{gpt_forward.1} parent=0 // loop_exit
    _

</llo_original>
